<compile_context>
chip_gen: v5e
topology: v5e:2x2
jax: 0.10.0
libtpu: 0.0.40
codegen_flags: <defaults>
</compile_context>

<pallas_src>
import functools

import jax
import jax.numpy as jnp
import numpy as np
from jax.experimental import pallas as pl
from jax.experimental.pallas import tpu as pltpu


_SHIFTS = ((0, 0), (0, 1), (1, 0), (1, 1))     # (sh, sw), row-major shift order
_DOWN_TAPS = ((1, 0), (0, 1), (1, 1))          # 3x3 tap i -> (phase, padded offset)


# ----------------------------------------------------------------------------
# Fused kernel (one grid step == one batch element)
# ----------------------------------------------------------------------------
def _spatial_att_kernel(x_ref, y_ref, wtc_ref, btc_ref, wcf_ref, bcf_ref,
                        wdn_ref, bdn_ref, wup_ref, bup_ref, alpha_ref,
                        out_ref, fp_ref, dnp_ref, *, use_trans):
    f32, bf16 = jnp.float32, jnp.bfloat16
    _, Hp, Wp, C = fp_ref.shape                  # fp_ref: (4, Hc+1, Wc+1, C)
    Hc, Wc = Hp - 1, Wp - 1
    Mb = Hc * Wc                                 # spatial positions per image

    a_tc, a_cf, a_dn = alpha_ref[0], alpha_ref[1], alpha_ref[2]

    def prelu(v, a):
        return jnp.where(v >= 0.0, v, a * v)

    def dot(a, w):                               # bf16 operands, f32 accumulate
        return jnp.dot(a.astype(bf16), w.astype(bf16),
                       preferred_element_type=f32)

    # Zero only the pad row / pad column; the interiors are overwritten below.
    fp_ref[:, 0:1, :, :] = jnp.zeros((4, 1, Wp, C), f32)
    fp_ref[:, :, 0:1, :] = jnp.zeros((4, Hp, 1, C), f32)
    dnp_ref[Hc:Hp, :, :] = jnp.zeros((1, Wp, C), f32)
    dnp_ref[:, Wc:Wp, :] = jnp.zeros((Hp, 1, C), f32)

    # ---- Stage 1: trans_conv (4-phase) + PReLU, concat with y, 1x1
    #      conv_fusion + PReLU.  All four sub-pixel phases are stacked along
    #      rows, so conv_fusion is ONE (4*Mb, 2C) x (2C, C) matmul and ONE
    #      store into the padded fusion scratch.
    y_rows = y_ref[...].reshape(4 * Mb, C)                       # rows = (phase, h, w)
    if use_trans:
        # x_ref: (Hc+1, Wc+1, C), zero-padded bottom/right.  Transposed conv in
        # 4-phase form as a sum of four shifted K=C dots (no im2col concat).
        xt = None
        for s, (sh, sw) in enumerate(_SHIFTS):
            patch = x_ref[sh:sh + Hc, sw:sw + Wc, :].reshape(Mb, C)
            part = dot(patch, wtc_ref[s * C:(s + 1) * C, :])     # (Mb, 4C)
            xt = part if xt is None else xt + part
        x_act = prelu(xt + btc_ref[...], a_tc)                   # (Mb, 4C) phase-cols
        # phase-on-columns -> phase-on-rows (4 lane slices, sublane concat)
        x_rows = jnp.concatenate(
            [x_act[:, p * C:(p + 1) * C] for p in range(4)], axis=0)
    else:
        x_rows = x_ref[...].reshape(4 * Mb, C)                   # already phase-rows

    f0 = jnp.concatenate([x_rows, y_rows], axis=-1)              # (4*Mb, 2C)
    f1 = prelu(dot(f0, wcf_ref[...]) + bcf_ref[...], a_cf)       # (4*Mb, C)
    fp_ref[:, 1:1 + Hc, 1:1 + Wc, :] = f1.reshape(4, Hc, Wc, C)

    # ---- Stage 2: `down` 3x3 stride-2 conv + PReLU in phase space.
    #      fine index 2p+i-1:  i=0 -> phase 1 @ p-1 ; i=1 -> phase 0 @ p ;
    #                          i=2 -> phase 1 @ p   (same for columns).
    #      Nine accumulating K=C dots instead of a (Mb, 9C) lane concat.
    dn_acc = None
    for i in range(3):
        ph_h, oh = _DOWN_TAPS[i]
        for j in range(3):
            ph_w, ow = _DOWN_TAPS[j]
            t = fp_ref[2 * ph_h + ph_w, oh:oh + Hc, ow:ow + Wc, :].reshape(Mb, C)
            k = 3 * i + j
            part = dot(t, wdn_ref[k * C:(k + 1) * C, :])
            dn_acc = part if dn_acc is None else dn_acc + part
    dn = prelu(dn_acc + bdn_ref[...], a_dn)                      # (Mb, C)
    dnp_ref[0:Hc, 0:Wc, :] = dn.reshape(Hc, Wc, C)

    # ---- Stage 3: up1 & up2 transposed convs (fused along N) + sigmoid.
    z = None
    for s, (sh, sw) in enumerate(_SHIFTS):
        patch = dnp_ref[sh:sh + Hc, sw:sw + Wc, :].reshape(Mb, C)
        part = dot(patch, wup_ref[s * C:(s + 1) * C, :])         # (Mb, 8C)
        z = part if z is None else z + part
    z = z + bup_ref[...]
    # exact sigmoid (exp runs on the EUP; overflow-safe: exp(+inf) -> 0 output)
    out_ref[...] = 1.0 / (1.0 + jnp.exp(-z))


# ----------------------------------------------------------------------------
# One-time weight packing (outside the hot path)
# ----------------------------------------------------------------------------
def _pack_transposed_conv(ws):
    """Pack ConvTranspose2d(k=3, s=2, p=1, op=1) weights for the 4-phase form.

    ws: list of weights, each (C_in, C_out, 3, 3).
    Rows   : 4 blocks of C_in for shifted inputs x[m+sh, n+sw], (sh,sw) row-major.
    Columns: 4 output phases (dh,dw) x heads x C_out.
    Phase (dh,dw) at shift (sh,sw) uses kernel tap (dh-2*sh+1, dw-2*sw+1) when
    in range, otherwise a zero block.
    """
    ws = [jnp.asarray(w, jnp.float32) for w in ws]
    c_in, c_out = ws[0].shape[0], ws[0].shape[1]
    zero = jnp.zeros((c_in, len(ws) * c_out), jnp.float32)
    cols = []
    for dh in (0, 1):
        for dw in (0, 1):
            rows = []
            for sh in (0, 1):
                for sw in (0, 1):
                    ki, kj = dh - 2 * sh + 1, dw - 2 * sw + 1
                    if 0 <= ki <= 2 and 0 <= kj <= 2:
                        rows.append(jnp.concatenate(
                            [w[:, :, ki, kj] for w in ws], axis=1))
                    else:
                        rows.append(zero)
            cols.append(jnp.concatenate(rows, axis=0))
    return jnp.concatenate(cols, axis=1)          # (4*C_in, 4*len(ws)*C_out)


def prepare_params(params):
    """Pre-pack all weights / biases / alphas once (weights cast to bf16)."""
    f32, bf16 = jnp.float32, jnp.bfloat16
    C = params["b_cf"].shape[0]
    bup = jnp.tile(jnp.concatenate([params["b_u1"], params["b_u2"]]), 4)
    return {
        "wtc": _pack_transposed_conv([params["w_tc"]]).astype(bf16),        # (4C, 4C)
        "btc": jnp.tile(params["b_tc"], 4).reshape(1, 4 * C).astype(f32),
        "wcf": jnp.transpose(params["w_cf"][:, :, 0, 0]).astype(bf16),      # (2C, C)
        "bcf": params["b_cf"].reshape(1, C).astype(f32),
        "wdn": jnp.transpose(params["w_dn"], (2, 3, 1, 0))
                  .reshape(9 * C, C).astype(bf16),                          # (9C, C)
        "bdn": params["b_dn"].reshape(1, C).astype(f32),
        "wup": _pack_transposed_conv([params["w_u1"], params["w_u2"]])
                  .astype(bf16),                                            # (4C, 8C)
        "bup": bup.reshape(1, 8 * C).astype(f32),
        "alphas": jnp.stack([params["a_tc"], params["a_cf"],
                             params["a_dn"]]).astype(f32),
    }


# ----------------------------------------------------------------------------
# Wrapper: phase split / merge + the single gridded pallas_call
# ----------------------------------------------------------------------------
def _split_phases(t_nhwc):
    """(B, H, W, C) -> (B, 4, (H//2)*(W//2), C); phase index = 2*dh + dw."""
    B, H, W, C = t_nhwc.shape
    t = t_nhwc.reshape(B, H // 2, 2, W // 2, 2, C)
    t = jnp.transpose(t, (0, 2, 4, 1, 3, 5))        # (B, dh, dw, Hc, Wc, C)
    return t.reshape(B, 4, (H // 2) * (W // 2), C)


def _merge_phases(out3d, B, Hc, Wc, C2):
    """(B, Hc*Wc, 4*C2) with col = (dh, dw, head*C) -> (B, C2, 2Hc, 2Wc)."""
    t = out3d.reshape(B, Hc, Wc, 2, 2, C2)
    t = jnp.transpose(t, (0, 5, 1, 3, 2, 4))
    return t.reshape(B, C2, 2 * Hc, 2 * Wc)


def spatial_att_forward(packed, x_nchw, y_nchw):
    B, C, Hx, Wx = x_nchw.shape
    _, _, Hy, Wy = y_nchw.shape
    assert Hy % 2 == 0 and Wy % 2 == 0
    use_trans = Hx < Hy
    Hc, Wc = Hy // 2, Wy // 2
    Mb = Hc * Wc

    y_nhwc = jnp.transpose(y_nchw, (0, 2, 3, 1)).astype(jnp.float32)
    y_in = _split_phases(y_nhwc)                                  # (B, 4, Mb, C)

    x_nhwc = jnp.transpose(x_nchw, (0, 2, 3, 1)).astype(jnp.float32)
    if use_trans:
        assert (Hx, Wx) == (Hc, Wc)
        x_in = jnp.pad(x_nhwc, ((0, 0), (0, 1), (0, 1), (0, 0)))  # (B, Hc+1, Wc+1, C)
        x_spec = pl.BlockSpec((None, Hc + 1, Wc + 1, C), lambda b: (b, 0, 0, 0))
    else:
        assert (Hx, Wx) == (Hy, Wy)
        x_in = _split_phases(x_nhwc)                              # (B, 4, Mb, C)
        x_spec = pl.BlockSpec((None, 4, Mb, C), lambda b: (b, 0, 0, 0))

    w_names = ("wtc", "btc", "wcf", "bcf", "wdn", "bdn", "wup", "bup")
    w_specs = [pl.BlockSpec(packed[k].shape, lambda b: (0, 0)) for k in w_names]
    in_specs = ([x_spec,
                 pl.BlockSpec((None, 4, Mb, C), lambda b: (b, 0, 0, 0))]
                + w_specs
                + [pl.BlockSpec(memory_space=pltpu.MemorySpace.SMEM)])
    out_spec = pl.BlockSpec((None, Mb, 8 * C), lambda b: (b, 0, 0))

    # VMEM budget: per-step blocks (double-buffered) + weights + scratch, with
    # headroom; capped at 64 MiB so it is valid on v7x as well as v5e/v6e.
    weight_bytes = sum(int(packed[k].size) * packed[k].dtype.itemsize
                       for k in w_names)
    blk_bytes = 4 * (x_in.size // B + y_in.size // B + Mb * 8 * C)
    scratch_bytes = 4 * 5 * (Hc + 1) * (Wc + 1) * C
    per_step = 2 * blk_bytes + scratch_bytes + weight_bytes
    vmem_limit = int(min(64 * 2 ** 20, max(16 * 2 ** 20, 6 * per_step)))

    # Advisory cost estimate (helps XLA schedule the surrounding layout ops).
    macs = B * Mb * C * C * ((16 if use_trans else 0) + 8 + 9 + 32)
    cost = pl.CostEstimate(
        flops=int(2 * macs),
        transcendentals=int(B * Mb * 8 * C),
        bytes_accessed=int(4 * (x_in.size + y_in.size + B * Mb * 8 * C)
                           + weight_bytes))

    out3d = pl.pallas_call(
        functools.partial(_spatial_att_kernel, use_trans=use_trans),
        out_shape=jax.ShapeDtypeStruct((B, Mb, 8 * C), jnp.float32),
        grid_spec=pltpu.PrefetchScalarGridSpec(
            num_scalar_prefetch=0,
            grid=(B,),
            in_specs=in_specs,
            out_specs=out_spec,
            scratch_shapes=[
                pltpu.VMEM((4, Hc + 1, Wc + 1, C), jnp.float32),  # padded fusion phases
                pltpu.VMEM((Hc + 1, Wc + 1, C), jnp.float32),     # padded `down` output
            ]),
        compiler_params=pltpu.CompilerParams(
            dimension_semantics=("parallel",),      # megacore-shard batch on v7x
            vmem_limit_bytes=vmem_limit),
        cost_estimate=cost,
    )(x_in, y_in, *(packed[k] for k in w_names), packed["alphas"])

    up = _merge_phases(out3d, B, Hc, Wc, 2 * C)                   # (B, 2C, Hy, Wy)
    return up[:, :C], up[:, C:]


# ----------------------------------------------------------------------------
# Pure-JAX reference (correctness check only)
# ----------------------------------------------------------------------------
def _ref_conv(x, w_oikk, b, stride, pad):
    out = jax.lax.conv_general_dilated(
        x, jnp.transpose(w_oikk, (2, 3, 1, 0)),
        window_strides=(stride, stride), padding=((pad, pad), (pad, pad)),
        dimension_numbers=("NHWC", "HWIO", "NHWC"))
    return out + b


def _ref_convT(x, w_iokk, b):
    w_eq = jnp.transpose(w_iokk, (1, 0, 2, 3))[:, :, ::-1, ::-1]
    out = jax.lax.conv_general_dilated(
        x, jnp.transpose(w_eq, (2, 3, 1, 0)),
        window_strides=(1, 1), padding=((1, 2), (1, 2)), lhs_dilation=(2, 2),
        dimension_numbers=("NHWC", "HWIO", "NHWC"))
    return out + b


def _prelu_ref(x, a):
    return jnp.where(x >= 0, x, a * x)


def spatial_att_reference(params, x_nchw, y_nchw):
    xh = jnp.transpose(x_nchw, (0, 2, 3, 1))
    yh = jnp.transpose(y_nchw, (0, 2, 3, 1))
    if x_nchw.shape[2] < y_nchw.shape[2]:
        xh = _prelu_ref(_ref_convT(xh, params["w_tc"], params["b_tc"]), params["a_tc"])
    fusion = jnp.concatenate([xh, yh], axis=-1)
    fusion = _prelu_ref(_ref_conv(fusion, params["w_cf"], params["b_cf"], 1, 0), params["a_cf"])
    fusion = _prelu_ref(_ref_conv(fusion, params["w_dn"], params["b_dn"], 2, 1), params["a_dn"])
    up_x = jax.nn.sigmoid(_ref_convT(fusion, params["w_u1"], params["b_u1"]))
    up_y = jax.nn.sigmoid(_ref_convT(fusion, params["w_u2"], params["b_u2"]))
    return (jnp.transpose(up_x, (0, 3, 1, 2)),
            jnp.transpose(up_y, (0, 3, 1, 2)))


# ----------------------------------------------------------------------------
if __name__ == "__main__":
    B, C = 2, 4            # args.feature_num = 4
    Hx, Hy = 8, 16         # x smaller -> exercises trans_conv branch

    key = jax.random.PRNGKey(0)
    ks = jax.random.split(key, 13)

    def rnd(k, shape, scale=0.1):
        return scale * jax.random.normal(k, shape, jnp.float32)

    params = {
        # ConvTranspose2d weights: (C_in, C_out, kH, kW)
        "w_tc": rnd(ks[0], (C, C, 3, 3)), "b_tc": rnd(ks[1], (C,)), "a_tc": jnp.float32(0.25),
        # Conv2d weights: (C_out, C_in, kH, kW)
        "w_cf": rnd(ks[2], (C, 2 * C, 1, 1)), "b_cf": rnd(ks[3], (C,)), "a_cf": jnp.float32(0.25),
        "w_dn": rnd(ks[4], (C, C, 3, 3)), "b_dn": rnd(ks[5], (C,)), "a_dn": jnp.float32(0.25),
        "w_u1": rnd(ks[6], (C, C, 3, 3)), "b_u1": rnd(ks[7], (C,)),
        "w_u2": rnd(ks[8], (C, C, 3, 3)), "b_u2": rnd(ks[9], (C,)),
    }

    x = jax.random.normal(ks[10], (B, C, Hx, Hx), jnp.float32)
    y = jax.random.normal(ks[11], (B, C, Hy, Hy), jnp.float32)

    packed = prepare_params(params)            # weights packed (and bf16-cast) once
    fwd = jax.jit(spatial_att_forward)

    # bf16 matmul operands with f32 accumulation -> bf16-level tolerances.
    RTOL, ATOL = 2e-2, 5e-3

    # Branch 1: x at half resolution -> trans_conv path.
    up_x, up_y = fwd(packed, x, y)
    jax.block_until_ready((up_x, up_y))
    assert up_x.shape == (B, C, Hy, Hy) and up_y.shape == (B, C, Hy, Hy)
    ref_x, ref_y = spatial_att_reference(params, x, y)
    np.testing.assert_allclose(np.asarray(up_x), np.asarray(ref_x), rtol=RTOL, atol=ATOL)
    np.testing.assert_allclose(np.asarray(up_y), np.asarray(ref_y), rtol=RTOL, atol=ATOL)

    # Branch 2: x already at y's resolution -> no trans_conv.
    x2 = jax.random.normal(ks[12], (B, C, Hy, Hy), jnp.float32)
    up_x2, up_y2 = fwd(packed, x2, y)
    jax.block_until_ready((up_x2, up_y2))
    ref_x2, ref_y2 = spatial_att_reference(params, x2, y)
    np.testing.assert_allclose(np.asarray(up_x2), np.asarray(ref_x2), rtol=RTOL, atol=ATOL)
    np.testing.assert_allclose(np.asarray(up_y2), np.asarray(ref_y2), rtol=RTOL, atol=ATOL)

    print("KERNEL_OK")
</pallas_src>

<mosaic_0001>
module attributes {stable_mosaic.version = 11 : i64} {
  func.func @_spatial_att_kernel(%arg0: i32, %arg1: memref<1x9x9x4xf32, #tpu.memory_space<vmem>>, %arg2: memref<1x4x64x4xf32, #tpu.memory_space<vmem>>, %arg3: memref<16x16xbf16, #tpu.memory_space<vmem>>, %arg4: memref<1x16xf32, #tpu.memory_space<vmem>>, %arg5: memref<8x4xbf16, #tpu.memory_space<vmem>>, %arg6: memref<1x4xf32, #tpu.memory_space<vmem>>, %arg7: memref<36x4xbf16, #tpu.memory_space<vmem>>, %arg8: memref<1x4xf32, #tpu.memory_space<vmem>>, %arg9: memref<16x32xbf16, #tpu.memory_space<vmem>>, %arg10: memref<1x32xf32, #tpu.memory_space<vmem>>, %arg11: memref<3xf32, #tpu.memory_space<smem>>, %arg12: memref<1x64x32xf32, #tpu.memory_space<vmem>>, %arg13: memref<4x9x9x4xf32, #tpu.memory_space<vmem>>, %arg14: memref<9x9x4xf32, #tpu.memory_space<vmem>>) attributes {dimension_semantics = [#tpu.dimension_semantics<parallel>], iteration_bounds = array<i64: 2>, scalar_prefetch = 0 : i64, scratch_operands = 2 : i64, tpu.core_type = #tpu.core_type<tc>, window_params = [{transform_indices = @transform_0, window_bounds = array<i64: 1, 9, 9, 4>}, {transform_indices = @transform_1, window_bounds = array<i64: 1, 4, 64, 4>}, {pipeline_mode = #tpu.pipeline_mode<synchronous>, transform_indices = @transform_2, window_bounds = array<i64: 16, 16>}, {pipeline_mode = #tpu.pipeline_mode<synchronous>, transform_indices = @transform_3, window_bounds = array<i64: 1, 16>}, {pipeline_mode = #tpu.pipeline_mode<synchronous>, transform_indices = @transform_4, window_bounds = array<i64: 8, 4>}, {pipeline_mode = #tpu.pipeline_mode<synchronous>, transform_indices = @transform_5, window_bounds = array<i64: 1, 4>}, {pipeline_mode = #tpu.pipeline_mode<synchronous>, transform_indices = @transform_6, window_bounds = array<i64: 36, 4>}, {pipeline_mode = #tpu.pipeline_mode<synchronous>, transform_indices = @transform_7, window_bounds = array<i64: 1, 4>}, {pipeline_mode = #tpu.pipeline_mode<synchronous>, transform_indices = @transform_8, window_bounds = array<i64: 16, 32>}, {pipeline_mode = #tpu.pipeline_mode<synchronous>, transform_indices = @transform_9, window_bounds = array<i64: 1, 32>}, {transform_indices = @transform_10, window_bounds = array<i64: 3>}, {transform_indices = @transform_11, window_bounds = array<i64: 1, 64, 32>}]} {
    %c0 = arith.constant 0 : index
    %0 = memref.load %arg11[%c0] : memref<3xf32, #tpu.memory_space<smem>>
    %c1 = arith.constant 1 : index
    %1 = memref.load %arg11[%c1] : memref<3xf32, #tpu.memory_space<smem>>
    %c2 = arith.constant 2 : index
    %2 = memref.load %arg11[%c2] : memref<3xf32, #tpu.memory_space<smem>>
    %cst = arith.constant 0.000000e+00 : f32
    %3 = vector.broadcast %cst : f32 to vector<4x1x9x4xf32>
    %c0_0 = arith.constant 0 : index
    %c0_1 = arith.constant 0 : index
    %c0_2 = arith.constant 0 : index
    %c0_3 = arith.constant 0 : index
    %4 = vector.load %arg13[%c0_0, %c0_1, %c0_2, %c0_3] : memref<4x9x9x4xf32, #tpu.memory_space<vmem>>, vector<4x1x9x4xf32>
    tpu.vector_store %arg13[%c0_0, %c0_1, %c0_2, %c0_3], %3 {strides = array<i32>} : memref<4x9x9x4xf32, #tpu.memory_space<vmem>>, vector<4x1x9x4xf32>,
    %cst_4 = arith.constant 0.000000e+00 : f32
    %5 = vector.broadcast %cst_4 : f32 to vector<4x9x1x4xf32>
    %c0_5 = arith.constant 0 : index
    %c0_6 = arith.constant 0 : index
    %c0_7 = arith.constant 0 : index
    %c0_8 = arith.constant 0 : index
    %6 = vector.load %arg13[%c0_5, %c0_6, %c0_7, %c0_8] : memref<4x9x9x4xf32, #tpu.memory_space<vmem>>, vector<4x9x1x4xf32>
    tpu.vector_store %arg13[%c0_5, %c0_6, %c0_7, %c0_8], %5 {strides = array<i32>} : memref<4x9x9x4xf32, #tpu.memory_space<vmem>>, vector<4x9x1x4xf32>,
    %cst_9 = arith.constant 0.000000e+00 : f32
    %7 = vector.broadcast %cst_9 : f32 to vector<1x9x4xf32>
    %c8 = arith.constant 8 : index
    %c0_10 = arith.constant 0 : index
    %c0_11 = arith.constant 0 : index
    %8 = vector.load %arg14[%c8, %c0_10, %c0_11] : memref<9x9x4xf32, #tpu.memory_space<vmem>>, vector<1x9x4xf32>
    tpu.vector_store %arg14[%c8, %c0_10, %c0_11], %7 {strides = array<i32>} : memref<9x9x4xf32, #tpu.memory_space<vmem>>, vector<1x9x4xf32>,
    %cst_12 = arith.constant 0.000000e+00 : f32
    %9 = vector.broadcast %cst_12 : f32 to vector<9x1x4xf32>
    %c0_13 = arith.constant 0 : index
    %c8_14 = arith.constant 8 : index
    %c0_15 = arith.constant 0 : index
    %10 = vector.load %arg14[%c0_13, %c8_14, %c0_15] : memref<9x9x4xf32, #tpu.memory_space<vmem>>, vector<9x1x4xf32>
    tpu.vector_store %arg14[%c0_13, %c8_14, %c0_15], %9 {strides = array<i32>} : memref<9x9x4xf32, #tpu.memory_space<vmem>>, vector<9x1x4xf32>,
    %c0_16 = arith.constant 0 : index
    %c0_17 = arith.constant 0 : index
    %c0_18 = arith.constant 0 : index
    %c0_19 = arith.constant 0 : index
    %11 = vector.load %arg2[%c0_16, %c0_17, %c0_18, %c0_19] : memref<1x4x64x4xf32, #tpu.memory_space<vmem>>, vector<1x4x64x4xf32>
    %12 = vector.shape_cast %11 : vector<1x4x64x4xf32> to vector<4x64x4xf32>
    %13 = vector.shape_cast %12 : vector<4x64x4xf32> to vector<256x4xf32>
    %c0_20 = arith.constant 0 : index
    %c0_21 = arith.constant 0 : index
    %c0_22 = arith.constant 0 : index
    %c0_23 = arith.constant 0 : index
    %14 = vector.load %arg1[%c0_20, %c0_21, %c0_22, %c0_23] : memref<1x9x9x4xf32, #tpu.memory_space<vmem>>, vector<1x8x8x4xf32>
    %15 = vector.shape_cast %14 : vector<1x8x8x4xf32> to vector<8x8x4xf32>
    %16 = vector.shape_cast %15 : vector<8x8x4xf32> to vector<64x4xf32>
    %c0_24 = arith.constant 0 : index
    %c0_25 = arith.constant 0 : index
    %17 = vector.load %arg3[%c0_24, %c0_25] : memref<16x16xbf16, #tpu.memory_space<vmem>>, vector<4x16xbf16>
    %18 = arith.truncf %16 : vector<64x4xf32> to vector<64x4xbf16>
    %cst_26 = arith.constant dense<0.000000e+00> : vector<64x16xf32>
    %19 = tpu.matmul %18, %17, %cst_26 {dimension_numbers = #tpu.dot_dimension_numbers<[1], [0], [0], [1], [0, 0, 1, 1], [], []>} : vector<64x4xbf16>, vector<4x16xbf16>, vector<64x16xf32> -> vector<64x16xf32>
    %c0_27 = arith.constant 0 : index
    %c0_28 = arith.constant 0 : index
    %c1_29 = arith.constant 1 : index
    %c0_30 = arith.constant 0 : index
    %20 = vector.load %arg1[%c0_27, %c0_28, %c1_29, %c0_30] : memref<1x9x9x4xf32, #tpu.memory_space<vmem>>, vector<1x8x8x4xf32>
    %21 = vector.shape_cast %20 : vector<1x8x8x4xf32> to vector<8x8x4xf32>
    %22 = vector.shape_cast %21 : vector<8x8x4xf32> to vector<64x4xf32>
    %c4 = arith.constant 4 : index
    %c0_31 = arith.constant 0 : index
    %23 = vector.load %arg3[%c4, %c0_31] : memref<16x16xbf16, #tpu.memory_space<vmem>>, vector<4x16xbf16>
    %24 = arith.truncf %22 : vector<64x4xf32> to vector<64x4xbf16>
    %cst_32 = arith.constant dense<0.000000e+00> : vector<64x16xf32>
    %25 = tpu.matmul %24, %23, %cst_32 {dimension_numbers = #tpu.dot_dimension_numbers<[1], [0], [0], [1], [0, 0, 1, 1], [], []>} : vector<64x4xbf16>, vector<4x16xbf16>, vector<64x16xf32> -> vector<64x16xf32>
    %26 = arith.addf %19, %25 : vector<64x16xf32>
    %c0_33 = arith.constant 0 : index
    %c1_34 = arith.constant 1 : index
    %c0_35 = arith.constant 0 : index
    %c0_36 = arith.constant 0 : index
    %27 = vector.load %arg1[%c0_33, %c1_34, %c0_35, %c0_36] : memref<1x9x9x4xf32, #tpu.memory_space<vmem>>, vector<1x8x8x4xf32>
    %28 = vector.shape_cast %27 : vector<1x8x8x4xf32> to vector<8x8x4xf32>
    %29 = vector.shape_cast %28 : vector<8x8x4xf32> to vector<64x4xf32>
    %c8_37 = arith.constant 8 : index
    %c0_38 = arith.constant 0 : index
    %30 = vector.load %arg3[%c8_37, %c0_38] : memref<16x16xbf16, #tpu.memory_space<vmem>>, vector<4x16xbf16>
    %31 = arith.truncf %29 : vector<64x4xf32> to vector<64x4xbf16>
    %cst_39 = arith.constant dense<0.000000e+00> : vector<64x16xf32>
    %32 = tpu.matmul %31, %30, %cst_39 {dimension_numbers = #tpu.dot_dimension_numbers<[1], [0], [0], [1], [0, 0, 1, 1], [], []>} : vector<64x4xbf16>, vector<4x16xbf16>, vector<64x16xf32> -> vector<64x16xf32>
    %33 = arith.addf %26, %32 : vector<64x16xf32>
    %c0_40 = arith.constant 0 : index
    %c1_41 = arith.constant 1 : index
    %c1_42 = arith.constant 1 : index
    %c0_43 = arith.constant 0 : index
    %34 = vector.load %arg1[%c0_40, %c1_41, %c1_42, %c0_43] : memref<1x9x9x4xf32, #tpu.memory_space<vmem>>, vector<1x8x8x4xf32>
    %35 = vector.shape_cast %34 : vector<1x8x8x4xf32> to vector<8x8x4xf32>
    %36 = vector.shape_cast %35 : vector<8x8x4xf32> to vector<64x4xf32>
    %c12 = arith.constant 12 : index
    %c0_44 = arith.constant 0 : index
    %37 = vector.load %arg3[%c12, %c0_44] : memref<16x16xbf16, #tpu.memory_space<vmem>>, vector<4x16xbf16>
    %38 = arith.truncf %36 : vector<64x4xf32> to vector<64x4xbf16>
    %cst_45 = arith.constant dense<0.000000e+00> : vector<64x16xf32>
    %39 = tpu.matmul %38, %37, %cst_45 {dimension_numbers = #tpu.dot_dimension_numbers<[1], [0], [0], [1], [0, 0, 1, 1], [], []>} : vector<64x4xbf16>, vector<4x16xbf16>, vector<64x16xf32> -> vector<64x16xf32>
    %40 = arith.addf %33, %39 : vector<64x16xf32>
    %c0_46 = arith.constant 0 : index
    %c0_47 = arith.constant 0 : index
    %41 = vector.load %arg4[%c0_46, %c0_47] : memref<1x16xf32, #tpu.memory_space<vmem>>, vector<1x16xf32>
    %42 = vector.broadcast %41 : vector<1x16xf32> to vector<64x16xf32>
    %43 = arith.addf %40, %42 : vector<64x16xf32>
    %cst_48 = arith.constant 0.000000e+00 : f32
    %44 = vector.broadcast %cst_48 : f32 to vector<64x16xf32>
    %45 = arith.cmpf oge, %43, %44 : vector<64x16xf32>
    %46 = vector.broadcast %0 : f32 to vector<64x16xf32>
    %47 = arith.mulf %46, %43 : vector<64x16xf32>
    %48 = arith.select %45, %43, %47 : vector<64x16xi1>, vector<64x16xf32>
    %49 = vector.extract_strided_slice %48 {offsets = [0, 0], sizes = [64, 4], strides = [1, 1]} : vector<64x16xf32> to vector<64x4xf32>
    %50 = vector.extract_strided_slice %48 {offsets = [0, 4], sizes = [64, 4], strides = [1, 1]} : vector<64x16xf32> to vector<64x4xf32>
    %51 = vector.extract_strided_slice %48 {offsets = [0, 8], sizes = [64, 4], strides = [1, 1]} : vector<64x16xf32> to vector<64x4xf32>
    %52 = vector.extract_strided_slice %48 {offsets = [0, 12], sizes = [64, 4], strides = [1, 1]} : vector<64x16xf32> to vector<64x4xf32>
    %53 = tpu.concatenate %49, %50, %51, %52 in 0 : vector<64x4xf32>, vector<64x4xf32>, vector<64x4xf32>, vector<64x4xf32> -> vector<256x4xf32>
    %54 = tpu.concatenate %53, %13 in 1 : vector<256x4xf32>, vector<256x4xf32> -> vector<256x8xf32>
    %c0_49 = arith.constant 0 : index
    %c0_50 = arith.constant 0 : index
    %55 = vector.load %arg5[%c0_49, %c0_50] : memref<8x4xbf16, #tpu.memory_space<vmem>>, vector<8x4xbf16>
    %56 = arith.truncf %54 : vector<256x8xf32> to vector<256x8xbf16>
    %cst_51 = arith.constant dense<0.000000e+00> : vector<256x4xf32>
    %57 = tpu.matmul %56, %55, %cst_51 {dimension_numbers = #tpu.dot_dimension_numbers<[1], [0], [0], [1], [0, 0, 1, 1], [], []>} : vector<256x8xbf16>, vector<8x4xbf16>, vector<256x4xf32> -> vector<256x4xf32>
    %c0_52 = arith.constant 0 : index
    %c0_53 = arith.constant 0 : index
    %58 = vector.load %arg6[%c0_52, %c0_53] : memref<1x4xf32, #tpu.memory_space<vmem>>, vector<1x4xf32>
    %59 = vector.broadcast %58 : vector<1x4xf32> to vector<256x4xf32>
    %60 = arith.addf %57, %59 : vector<256x4xf32>
    %cst_54 = arith.constant 0.000000e+00 : f32
    %61 = vector.broadcast %cst_54 : f32 to vector<256x4xf32>
    %62 = arith.cmpf oge, %60, %61 : vector<256x4xf32>
    %63 = vector.broadcast %1 : f32 to vector<256x4xf32>
    %64 = arith.mulf %63, %60 : vector<256x4xf32>
    %65 = arith.select %62, %60, %64 : vector<256x4xi1>, vector<256x4xf32>
    %66 = vector.shape_cast %65 : vector<256x4xf32> to vector<4x8x8x4xf32>
    %c0_55 = arith.constant 0 : index
    %c1_56 = arith.constant 1 : index
    %c1_57 = arith.constant 1 : index
    %c0_58 = arith.constant 0 : index
    %67 = vector.load %arg13[%c0_55, %c1_56, %c1_57, %c0_58] : memref<4x9x9x4xf32, #tpu.memory_space<vmem>>, vector<4x8x8x4xf32>
    tpu.vector_store %arg13[%c0_55, %c1_56, %c1_57, %c0_58], %66 {strides = array<i32>} : memref<4x9x9x4xf32, #tpu.memory_space<vmem>>, vector<4x8x8x4xf32>,
    %c3 = arith.constant 3 : index
    %c0_59 = arith.constant 0 : index
    %c0_60 = arith.constant 0 : index
    %c0_61 = arith.constant 0 : index
    %68 = vector.load %arg13[%c3, %c0_59, %c0_60, %c0_61] : memref<4x9x9x4xf32, #tpu.memory_space<vmem>>, vector<1x8x8x4xf32>
    %69 = vector.shape_cast %68 : vector<1x8x8x4xf32> to vector<8x8x4xf32>
    %70 = vector.shape_cast %69 : vector<8x8x4xf32> to vector<64x4xf32>
    %c0_62 = arith.constant 0 : index
    %c0_63 = arith.constant 0 : index
    %71 = vector.load %arg7[%c0_62, %c0_63] : memref<36x4xbf16, #tpu.memory_space<vmem>>, vector<4x4xbf16>
    %72 = arith.truncf %70 : vector<64x4xf32> to vector<64x4xbf16>
    %cst_64 = arith.constant dense<0.000000e+00> : vector<64x4xf32>
    %73 = tpu.matmul %72, %71, %cst_64 {dimension_numbers = #tpu.dot_dimension_numbers<[1], [0], [0], [1], [0, 0, 1, 1], [], []>} : vector<64x4xbf16>, vector<4x4xbf16>, vector<64x4xf32> -> vector<64x4xf32>
    %c2_65 = arith.constant 2 : index
    %c0_66 = arith.constant 0 : index
    %c1_67 = arith.constant 1 : index
    %c0_68 = arith.constant 0 : index
    %74 = vector.load %arg13[%c2_65, %c0_66, %c1_67, %c0_68] : memref<4x9x9x4xf32, #tpu.memory_space<vmem>>, vector<1x8x8x4xf32>
    %75 = vector.shape_cast %74 : vector<1x8x8x4xf32> to vector<8x8x4xf32>
    %76 = vector.shape_cast %75 : vector<8x8x4xf32> to vector<64x4xf32>
    %c4_69 = arith.constant 4 : index
    %c0_70 = arith.constant 0 : index
    %77 = vector.load %arg7[%c4_69, %c0_70] : memref<36x4xbf16, #tpu.memory_space<vmem>>, vector<4x4xbf16>
    %78 = arith.truncf %76 : vector<64x4xf32> to vector<64x4xbf16>
    %cst_71 = arith.constant dense<0.000000e+00> : vector<64x4xf32>
    %79 = tpu.matmul %78, %77, %cst_71 {dimension_numbers = #tpu.dot_dimension_numbers<[1], [0], [0], [1], [0, 0, 1, 1], [], []>} : vector<64x4xbf16>, vector<4x4xbf16>, vector<64x4xf32> -> vector<64x4xf32>
    %80 = arith.addf %73, %79 : vector<64x4xf32>
    %c3_72 = arith.constant 3 : index
    %c0_73 = arith.constant 0 : index
    %c1_74 = arith.constant 1 : index
    %c0_75 = arith.constant 0 : index
    %81 = vector.load %arg13[%c3_72, %c0_73, %c1_74, %c0_75] : memref<4x9x9x4xf32, #tpu.memory_space<vmem>>, vector<1x8x8x4xf32>
    %82 = vector.shape_cast %81 : vector<1x8x8x4xf32> to vector<8x8x4xf32>
    %83 = vector.shape_cast %82 : vector<8x8x4xf32> to vector<64x4xf32>
    %c8_76 = arith.constant 8 : index
    %c0_77 = arith.constant 0 : index
    %84 = vector.load %arg7[%c8_76, %c0_77] : memref<36x4xbf16, #tpu.memory_space<vmem>>, vector<4x4xbf16>
    %85 = arith.truncf %83 : vector<64x4xf32> to vector<64x4xbf16>
    %cst_78 = arith.constant dense<0.000000e+00> : vector<64x4xf32>
    %86 = tpu.matmul %85, %84, %cst_78 {dimension_numbers = #tpu.dot_dimension_numbers<[1], [0], [0], [1], [0, 0, 1, 1], [], []>} : vector<64x4xbf16>, vector<4x4xbf16>, vector<64x4xf32> -> vector<64x4xf32>
    %87 = arith.addf %80, %86 : vector<64x4xf32>
    %c1_79 = arith.constant 1 : index
    %c1_80 = arith.constant 1 : index
    %c0_81 = arith.constant 0 : index
    %c0_82 = arith.constant 0 : index
    %88 = vector.load %arg13[%c1_79, %c1_80, %c0_81, %c0_82] : memref<4x9x9x4xf32, #tpu.memory_space<vmem>>, vector<1x8x8x4xf32>
    %89 = vector.shape_cast %88 : vector<1x8x8x4xf32> to vector<8x8x4xf32>
    %90 = vector.shape_cast %89 : vector<8x8x4xf32> to vector<64x4xf32>
    %c12_83 = arith.constant 12 : index
    %c0_84 = arith.constant 0 : index
    %91 = vector.load %arg7[%c12_83, %c0_84] : memref<36x4xbf16, #tpu.memory_space<vmem>>, vector<4x4xbf16>
    %92 = arith.truncf %90 : vector<64x4xf32> to vector<64x4xbf16>
    %cst_85 = arith.constant dense<0.000000e+00> : vector<64x4xf32>
    %93 = tpu.matmul %92, %91, %cst_85 {dimension_numbers = #tpu.dot_dimension_numbers<[1], [0], [0], [1], [0, 0, 1, 1], [], []>} : vector<64x4xbf16>, vector<4x4xbf16>, vector<64x4xf32> -> vector<64x4xf32>
    %94 = arith.addf %87, %93 : vector<64x4xf32>
    %c0_86 = arith.constant 0 : index
    %c1_87 = arith.constant 1 : index
    %c1_88 = arith.constant 1 : index
    %c0_89 = arith.constant 0 : index
    %95 = vector.load %arg13[%c0_86, %c1_87, %c1_88, %c0_89] : memref<4x9x9x4xf32, #tpu.memory_space<vmem>>, vector<1x8x8x4xf32>
    %96 = vector.shape_cast %95 : vector<1x8x8x4xf32> to vector<8x8x4xf32>
    %97 = vector.shape_cast %96 : vector<8x8x4xf32> to vector<64x4xf32>
    %c16 = arith.constant 16 : index
    %c0_90 = arith.constant 0 : index
    %98 = vector.load %arg7[%c16, %c0_90] : memref<36x4xbf16, #tpu.memory_space<vmem>>, vector<4x4xbf16>
    %99 = arith.truncf %97 : vector<64x4xf32> to vector<64x4xbf16>
    %cst_91 = arith.constant dense<0.000000e+00> : vector<64x4xf32>
    %100 = tpu.matmul %99, %98, %cst_91 {dimension_numbers = #tpu.dot_dimension_numbers<[1], [0], [0], [1], [0, 0, 1, 1], [], []>} : vector<64x4xbf16>, vector<4x4xbf16>, vector<64x4xf32> -> vector<64x4xf32>
    %101 = arith.addf %94, %100 : vector<64x4xf32>
    %c1_92 = arith.constant 1 : index
    %c1_93 = arith.constant 1 : index
    %c1_94 = arith.constant 1 : index
    %c0_95 = arith.constant 0 : index
    %102 = vector.load %arg13[%c1_92, %c1_93, %c1_94, %c0_95] : memref<4x9x9x4xf32, #tpu.memory_space<vmem>>, vector<1x8x8x4xf32>
    %103 = vector.shape_cast %102 : vector<1x8x8x4xf32> to vector<8x8x4xf32>
    %104 = vector.shape_cast %103 : vector<8x8x4xf32> to vector<64x4xf32>
    %c20 = arith.constant 20 : index
    %c0_96 = arith.constant 0 : index
    %105 = vector.load %arg7[%c20, %c0_96] : memref<36x4xbf16, #tpu.memory_space<vmem>>, vector<4x4xbf16>
    %106 = arith.truncf %104 : vector<64x4xf32> to vector<64x4xbf16>
    %cst_97 = arith.constant dense<0.000000e+00> : vector<64x4xf32>
    %107 = tpu.matmul %106, %105, %cst_97 {dimension_numbers = #tpu.dot_dimension_numbers<[1], [0], [0], [1], [0, 0, 1, 1], [], []>} : vector<64x4xbf16>, vector<4x4xbf16>, vector<64x4xf32> -> vector<64x4xf32>
    %108 = arith.addf %101, %107 : vector<64x4xf32>
    %c3_98 = arith.constant 3 : index
    %c1_99 = arith.constant 1 : index
    %c0_100 = arith.constant 0 : index
    %c0_101 = arith.constant 0 : index
    %109 = vector.load %arg13[%c3_98, %c1_99, %c0_100, %c0_101] : memref<4x9x9x4xf32, #tpu.memory_space<vmem>>, vector<1x8x8x4xf32>
    %110 = vector.shape_cast %109 : vector<1x8x8x4xf32> to vector<8x8x4xf32>
    %111 = vector.shape_cast %110 : vector<8x8x4xf32> to vector<64x4xf32>
    %c24 = arith.constant 24 : index
    %c0_102 = arith.constant 0 : index
    %112 = vector.load %arg7[%c24, %c0_102] : memref<36x4xbf16, #tpu.memory_space<vmem>>, vector<4x4xbf16>
    %113 = arith.truncf %111 : vector<64x4xf32> to vector<64x4xbf16>
    %cst_103 = arith.constant dense<0.000000e+00> : vector<64x4xf32>
    %114 = tpu.matmul %113, %112, %cst_103 {dimension_numbers = #tpu.dot_dimension_numbers<[1], [0], [0], [1], [0, 0, 1, 1], [], []>} : vector<64x4xbf16>, vector<4x4xbf16>, vector<64x4xf32> -> vector<64x4xf32>
    %115 = arith.addf %108, %114 : vector<64x4xf32>
    %c2_104 = arith.constant 2 : index
    %c1_105 = arith.constant 1 : index
    %c1_106 = arith.constant 1 : index
    %c0_107 = arith.constant 0 : index
    %116 = vector.load %arg13[%c2_104, %c1_105, %c1_106, %c0_107] : memref<4x9x9x4xf32, #tpu.memory_space<vmem>>, vector<1x8x8x4xf32>
    %117 = vector.shape_cast %116 : vector<1x8x8x4xf32> to vector<8x8x4xf32>
    %118 = vector.shape_cast %117 : vector<8x8x4xf32> to vector<64x4xf32>
    %c28 = arith.constant 28 : index
    %c0_108 = arith.constant 0 : index
    %119 = vector.load %arg7[%c28, %c0_108] : memref<36x4xbf16, #tpu.memory_space<vmem>>, vector<4x4xbf16>
    %120 = arith.truncf %118 : vector<64x4xf32> to vector<64x4xbf16>
    %cst_109 = arith.constant dense<0.000000e+00> : vector<64x4xf32>
    %121 = tpu.matmul %120, %119, %cst_109 {dimension_numbers = #tpu.dot_dimension_numbers<[1], [0], [0], [1], [0, 0, 1, 1], [], []>} : vector<64x4xbf16>, vector<4x4xbf16>, vector<64x4xf32> -> vector<64x4xf32>
    %122 = arith.addf %115, %121 : vector<64x4xf32>
    %c3_110 = arith.constant 3 : index
    %c1_111 = arith.constant 1 : index
    %c1_112 = arith.constant 1 : index
    %c0_113 = arith.constant 0 : index
    %123 = vector.load %arg13[%c3_110, %c1_111, %c1_112, %c0_113] : memref<4x9x9x4xf32, #tpu.memory_space<vmem>>, vector<1x8x8x4xf32>
    %124 = vector.shape_cast %123 : vector<1x8x8x4xf32> to vector<8x8x4xf32>
    %125 = vector.shape_cast %124 : vector<8x8x4xf32> to vector<64x4xf32>
    %c32 = arith.constant 32 : index
    %c0_114 = arith.constant 0 : index
    %126 = vector.load %arg7[%c32, %c0_114] : memref<36x4xbf16, #tpu.memory_space<vmem>>, vector<4x4xbf16>
    %127 = arith.truncf %125 : vector<64x4xf32> to vector<64x4xbf16>
    %cst_115 = arith.constant dense<0.000000e+00> : vector<64x4xf32>
    %128 = tpu.matmul %127, %126, %cst_115 {dimension_numbers = #tpu.dot_dimension_numbers<[1], [0], [0], [1], [0, 0, 1, 1], [], []>} : vector<64x4xbf16>, vector<4x4xbf16>, vector<64x4xf32> -> vector<64x4xf32>
    %129 = arith.addf %122, %128 : vector<64x4xf32>
    %c0_116 = arith.constant 0 : index
    %c0_117 = arith.constant 0 : index
    %130 = vector.load %arg8[%c0_116, %c0_117] : memref<1x4xf32, #tpu.memory_space<vmem>>, vector<1x4xf32>
    %131 = vector.broadcast %130 : vector<1x4xf32> to vector<64x4xf32>
    %132 = arith.addf %129, %131 : vector<64x4xf32>
    %cst_118 = arith.constant 0.000000e+00 : f32
    %133 = vector.broadcast %cst_118 : f32 to vector<64x4xf32>
    %134 = arith.cmpf oge, %132, %133 : vector<64x4xf32>
    %135 = vector.broadcast %2 : f32 to vector<64x4xf32>
    %136 = arith.mulf %135, %132 : vector<64x4xf32>
    %137 = arith.select %134, %132, %136 : vector<64x4xi1>, vector<64x4xf32>
    %138 = vector.shape_cast %137 : vector<64x4xf32> to vector<8x8x4xf32>
    %c0_119 = arith.constant 0 : index
    %c0_120 = arith.constant 0 : index
    %c0_121 = arith.constant 0 : index
    %139 = vector.load %arg14[%c0_119, %c0_120, %c0_121] : memref<9x9x4xf32, #tpu.memory_space<vmem>>, vector<8x8x4xf32>
    tpu.vector_store %arg14[%c0_119, %c0_120, %c0_121], %138 {strides = array<i32>} : memref<9x9x4xf32, #tpu.memory_space<vmem>>, vector<8x8x4xf32>,
    %c0_122 = arith.constant 0 : index
    %c0_123 = arith.constant 0 : index
    %c0_124 = arith.constant 0 : index
    %140 = vector.load %arg14[%c0_122, %c0_123, %c0_124] : memref<9x9x4xf32, #tpu.memory_space<vmem>>, vector<8x8x4xf32>
    %141 = vector.shape_cast %140 : vector<8x8x4xf32> to vector<64x4xf32>
    %c0_125 = arith.constant 0 : index
    %c0_126 = arith.constant 0 : index
    %142 = vector.load %arg9[%c0_125, %c0_126] : memref<16x32xbf16, #tpu.memory_space<vmem>>, vector<4x32xbf16>
    %143 = arith.truncf %141 : vector<64x4xf32> to vector<64x4xbf16>
    %cst_127 = arith.constant dense<0.000000e+00> : vector<64x32xf32>
    %144 = tpu.matmul %143, %142, %cst_127 {dimension_numbers = #tpu.dot_dimension_numbers<[1], [0], [0], [1], [0, 0, 1, 1], [], []>} : vector<64x4xbf16>, vector<4x32xbf16>, vector<64x32xf32> -> vector<64x32xf32>
    %c0_128 = arith.constant 0 : index
    %c1_129 = arith.constant 1 : index
    %c0_130 = arith.constant 0 : index
    %145 = vector.load %arg14[%c0_128, %c1_129, %c0_130] : memref<9x9x4xf32, #tpu.memory_space<vmem>>, vector<8x8x4xf32>
    %146 = vector.shape_cast %145 : vector<8x8x4xf32> to vector<64x4xf32>
    %c4_131 = arith.constant 4 : index
    %c0_132 = arith.constant 0 : index
    %147 = vector.load %arg9[%c4_131, %c0_132] : memref<16x32xbf16, #tpu.memory_space<vmem>>, vector<4x32xbf16>
    %148 = arith.truncf %146 : vector<64x4xf32> to vector<64x4xbf16>
    %cst_133 = arith.constant dense<0.000000e+00> : vector<64x32xf32>
    %149 = tpu.matmul %148, %147, %cst_133 {dimension_numbers = #tpu.dot_dimension_numbers<[1], [0], [0], [1], [0, 0, 1, 1], [], []>} : vector<64x4xbf16>, vector<4x32xbf16>, vector<64x32xf32> -> vector<64x32xf32>
    %150 = arith.addf %144, %149 : vector<64x32xf32>
    %c1_134 = arith.constant 1 : index
    %c0_135 = arith.constant 0 : index
    %c0_136 = arith.constant 0 : index
    %151 = vector.load %arg14[%c1_134, %c0_135, %c0_136] : memref<9x9x4xf32, #tpu.memory_space<vmem>>, vector<8x8x4xf32>
    %152 = vector.shape_cast %151 : vector<8x8x4xf32> to vector<64x4xf32>
    %c8_137 = arith.constant 8 : index
    %c0_138 = arith.constant 0 : index
    %153 = vector.load %arg9[%c8_137, %c0_138] : memref<16x32xbf16, #tpu.memory_space<vmem>>, vector<4x32xbf16>
    %154 = arith.truncf %152 : vector<64x4xf32> to vector<64x4xbf16>
    %cst_139 = arith.constant dense<0.000000e+00> : vector<64x32xf32>
    %155 = tpu.matmul %154, %153, %cst_139 {dimension_numbers = #tpu.dot_dimension_numbers<[1], [0], [0], [1], [0, 0, 1, 1], [], []>} : vector<64x4xbf16>, vector<4x32xbf16>, vector<64x32xf32> -> vector<64x32xf32>
    %156 = arith.addf %150, %155 : vector<64x32xf32>
    %c1_140 = arith.constant 1 : index
    %c1_141 = arith.constant 1 : index
    %c0_142 = arith.constant 0 : index
    %157 = vector.load %arg14[%c1_140, %c1_141, %c0_142] : memref<9x9x4xf32, #tpu.memory_space<vmem>>, vector<8x8x4xf32>
    %158 = vector.shape_cast %157 : vector<8x8x4xf32> to vector<64x4xf32>
    %c12_143 = arith.constant 12 : index
    %c0_144 = arith.constant 0 : index
    %159 = vector.load %arg9[%c12_143, %c0_144] : memref<16x32xbf16, #tpu.memory_space<vmem>>, vector<4x32xbf16>
    %160 = arith.truncf %158 : vector<64x4xf32> to vector<64x4xbf16>
    %cst_145 = arith.constant dense<0.000000e+00> : vector<64x32xf32>
    %161 = tpu.matmul %160, %159, %cst_145 {dimension_numbers = #tpu.dot_dimension_numbers<[1], [0], [0], [1], [0, 0, 1, 1], [], []>} : vector<64x4xbf16>, vector<4x32xbf16>, vector<64x32xf32> -> vector<64x32xf32>
    %162 = arith.addf %156, %161 : vector<64x32xf32>
    %c0_146 = arith.constant 0 : index
    %c0_147 = arith.constant 0 : index
    %163 = vector.load %arg10[%c0_146, %c0_147] : memref<1x32xf32, #tpu.memory_space<vmem>>, vector<1x32xf32>
    %164 = vector.broadcast %163 : vector<1x32xf32> to vector<64x32xf32>
    %165 = arith.addf %162, %164 : vector<64x32xf32>
    %cst_148 = arith.constant 0.000000e+00 : f32
    %166 = vector.broadcast %cst_148 : f32 to vector<64x32xf32>
    %167 = arith.subf %166, %165 : vector<64x32xf32>
    %168 = math.exp %167 : vector<64x32xf32>
    %cst_149 = arith.constant 1.000000e+00 : f32
    %169 = vector.broadcast %cst_149 : f32 to vector<64x32xf32>
    %170 = arith.addf %169, %168 : vector<64x32xf32>
    %cst_150 = arith.constant 1.000000e+00 : f32
    %171 = vector.broadcast %cst_150 : f32 to vector<64x32xf32>
    %172 = arith.divf %171, %170 : vector<64x32xf32>
    %c0_151 = arith.constant 0 : index
    %c0_152 = arith.constant 0 : index
    %c0_153 = arith.constant 0 : index
    %173 = vector.load %arg12[%c0_151, %c0_152, %c0_153] : memref<1x64x32xf32, #tpu.memory_space<vmem>>, vector<1x64x32xf32>
    %174 = vector.shape_cast %173 : vector<1x64x32xf32> to vector<64x32xf32>
    %175 = vector.shape_cast %172 : vector<64x32xf32> to vector<1x64x32xf32>
    tpu.vector_store %arg12[%c0_151, %c0_152, %c0_153], %175 {strides = array<i32>} : memref<1x64x32xf32, #tpu.memory_space<vmem>>, vector<1x64x32xf32>,
    return
  }
  func.func @transform_0(%arg0: i32) -> (i32, i32, i32, i32) {
    %c0_i32 = arith.constant 0 : i32
    %c0_i32_0 = arith.constant 0 : i32
    %c0_i32_1 = arith.constant 0 : i32
    %c0_i32_2 = arith.constant 0 : i32
    return %arg0, %c0_i32, %c0_i32_0, %c0_i32_1 : i32, i32, i32, i32
  }
  func.func @transform_1(%arg0: i32) -> (i32, i32, i32, i32) {
    %c0_i32 = arith.constant 0 : i32
    %c0_i32_0 = arith.constant 0 : i32
    %c0_i32_1 = arith.constant 0 : i32
    %c0_i32_2 = arith.constant 0 : i32
    return %arg0, %c0_i32, %c0_i32_0, %c0_i32_1 : i32, i32, i32, i32
  }
  func.func @transform_2(%arg0: i32) -> (i32, i32) {
    %c0_i32 = arith.constant 0 : i32
    %c0_i32_0 = arith.constant 0 : i32
    %c0_i32_1 = arith.constant 0 : i32
    return %c0_i32, %c0_i32_0 : i32, i32
  }
  func.func @transform_3(%arg0: i32) -> (i32, i32) {
    %c0_i32 = arith.constant 0 : i32
    %c0_i32_0 = arith.constant 0 : i32
    %c0_i32_1 = arith.constant 0 : i32
    return %c0_i32, %c0_i32_0 : i32, i32
  }
  func.func @transform_4(%arg0: i32) -> (i32, i32) {
    %c0_i32 = arith.constant 0 : i32
    %c0_i32_0 = arith.constant 0 : i32
    %c0_i32_1 = arith.constant 0 : i32
    return %c0_i32, %c0_i32_0 : i32, i32
  }
  func.func @transform_5(%arg0: i32) -> (i32, i32) {
    %c0_i32 = arith.constant 0 : i32
    %c0_i32_0 = arith.constant 0 : i32
    %c0_i32_1 = arith.constant 0 : i32
    return %c0_i32, %c0_i32_0 : i32, i32
  }
  func.func @transform_6(%arg0: i32) -> (i32, i32) {
    %c0_i32 = arith.constant 0 : i32
    %c0_i32_0 = arith.constant 0 : i32
    %c0_i32_1 = arith.constant 0 : i32
    return %c0_i32, %c0_i32_0 : i32, i32
  }
  func.func @transform_7(%arg0: i32) -> (i32, i32) {
    %c0_i32 = arith.constant 0 : i32
    %c0_i32_0 = arith.constant 0 : i32
    %c0_i32_1 = arith.constant 0 : i32
    return %c0_i32, %c0_i32_0 : i32, i32
  }
  func.func @transform_8(%arg0: i32) -> (i32, i32) {
    %c0_i32 = arith.constant 0 : i32
    %c0_i32_0 = arith.constant 0 : i32
    %c0_i32_1 = arith.constant 0 : i32
    return %c0_i32, %c0_i32_0 : i32, i32
  }
  func.func @transform_9(%arg0: i32) -> (i32, i32) {
    %c0_i32 = arith.constant 0 : i32
    %c0_i32_0 = arith.constant 0 : i32
    %c0_i32_1 = arith.constant 0 : i32
    return %c0_i32, %c0_i32_0 : i32, i32
  }
  func.func @transform_10(%arg0: i32) -> i32 {
    %c0_i32 = arith.constant 0 : i32
    %c0_i32_0 = arith.constant 0 : i32
    return %c0_i32 : i32
  }
  func.func @transform_11(%arg0: i32) -> (i32, i32, i32) {
    %c0_i32 = arith.constant 0 : i32
    %c0_i32_0 = arith.constant 0 : i32
    %c0_i32_1 = arith.constant 0 : i32
    return %arg0, %c0_i32, %c0_i32_0 : i32, i32, i32
  }
}

</mosaic_0001>

<llo_original>
// kernel: spatial_att_forward.1
$region0: #{spatial_att_forward.1}
  #allocation0 [shape = 'u32[]', space=smem, size = 0x4, offset = 0x4, fixed_abs, tag = 'smem constant byte address 0x4 - core index']
  #allocation1 [shape = 'u32[72,128]{1,0:T(1,128)}', space=vmem, size = 0x9000, scoped, tag = 'internal scratch']
  #allocation2 [shape = 'f32[4,9,9,4]{3,2,1,0:T(8,128)}', space=vmem, size = 0x48000, scoped, tag = 'scratch operand']
  #allocation3 [shape = 'f32[9,9,4]{2,1,0:T(8,128)}', space=vmem, size = 0x12000, scoped, tag = 'scratch operand']
  %s0 = inlined_call_operand.vmem [shape: f32[2,9,9,4], index: 0, kind: input, shape index: {}]
  %s1 = inlined_call_operand.vmem [shape: f32[2,4,64,4], index: 1, kind: input, shape index: {}]
  %s2 = inlined_call_operand.vmem [shape: bf16[16,16], index: 2, kind: input, shape index: {}]
  %s3 = inlined_call_operand.vmem [shape: f32[1,16], index: 3, kind: input, shape index: {}]
  %s4 = inlined_call_operand.vmem [shape: bf16[8,4], index: 4, kind: input, shape index: {}]
  %s5 = inlined_call_operand.vmem [shape: f32[1,4], index: 5, kind: input, shape index: {}]
  %s6 = inlined_call_operand.vmem [shape: bf16[36,4], index: 6, kind: input, shape index: {}]
  %s7 = inlined_call_operand.vmem [shape: f32[1,4], index: 7, kind: input, shape index: {}]
  %s8 = inlined_call_operand.vmem [shape: bf16[16,32], index: 8, kind: input, shape index: {}]
  %s9 = inlined_call_operand.vmem [shape: f32[1,32], index: 9, kind: input, shape index: {}]
  %s10 = inlined_call_operand.vmem [shape: f32[3], index: 10, kind: input, shape index: {}]
  %s11 = inlined_call_operand.vmem [shape: f32[2,64,32], index: 11, kind: output, shape index: {}]
  %s12 = sld [smem:[#allocation0]]
  $region81: #{spatial_att_forward.1} parent=0
    _
  %s14 = ssub.s32 1, %s12
  %s15 = scalar_select 0, %s14, %s12
  $region1: #{spatial_att_forward.1} parent=0
    #allocation4 [shape = 'u8[512]{0}', space=smem, size = 0x200, scoped, tag = 'input window, operand 10, single buffered']
    #allocation5 [shape = 's32[2]{0}', space=sflag, size = 0x8, scoped, tag = 'scoped memory for spatial_att_forward.1']
    %16 = vsyncpa [#allocation5], 0
    loop: start=0, step=1, limit=4
    $region2: #{spatial_att_forward.1} parent=1 // loop_pre_header
      _
    $region3: #{spatial_att_forward.1} parent=1 // loop_header
      %s18 = sphi 0, %s22
      %p19 = scmp.ge.s32.totalorder %s18, 4
      %s28 = sphi 0, %s30
      %s31 = sphi 0, %s28
      %s32 = sphi 0, %s31
      %s48 = sphi 0, %s32
      %s54 = sphi 0, %s56
      %s57 = sphi 0, %s54
      %s58 = sphi 0, %s57
      %s74 = sphi 0, %s58
      %s78 = sphi 0, %s78
      %s80 = sphi 0, %s78
      %s81 = sphi 0, %s80
      %s95 = sphi 0, %s81
      %s99 = sphi 0, %s99
      %s101 = sphi 0, %s99
      %s102 = sphi 0, %s101
      %s116 = sphi 0, %s102
      %s120 = sphi 0, %s120
      %s122 = sphi 0, %s120
      %s123 = sphi 0, %s122
      %s137 = sphi 0, %s123
      %s141 = sphi 0, %s141
      %s143 = sphi 0, %s141
      %s144 = sphi 0, %s143
      %s158 = sphi 0, %s144
      %s162 = sphi 0, %s162
      %s164 = sphi 0, %s162
      %s165 = sphi 0, %s164
      %s179 = sphi 0, %s165
      %s183 = sphi 0, %s183
      %s185 = sphi 0, %s183
      %s186 = sphi 0, %s185
      %s200 = sphi 0, %s186
      %s204 = sphi 0, %s204
      %s206 = sphi 0, %s204
      %s207 = sphi 0, %s206
      %s221 = sphi 0, %s207
      %s225 = sphi 0, %s225
      %s227 = sphi 0, %s225
      %s228 = sphi 0, %s227
      %s242 = sphi 0, %s228
      %s246 = sphi 0, %s246
      %s248 = sphi 0, %s246
      %s249 = sphi 0, %s248
      %s263 = sphi 0, %s249
      %s269 = sphi 0, %s271
      %s272 = sphi 0, %s269
      %s273 = sphi 0, %s272
      %s289 = sphi 0, %s273
    $region4: #{spatial_att_forward.1} parent=1 // loop_header_branch
      %21 = sbr.rel (%p19) target = $region8
    $region5: #{spatial_att_forward.1} parent=1 // loop_body
      %s23 = ssub.s32 %s18, 1
      %s24 = ssub.s32 %s18, 2
      %s25 = sadd.s32 %s18, 1
      %s26 = ssub.s32 %s18, %s25
      %p27 = scmp.eq.s32.totalorder %s26, 0
      %s29 = sadd.s32 %s28, 1
      %s30 = scalar_select %p27, %s28, %s29
      %p33 = pneg %p27
      %p34 = scmp.eq.s32.totalorder %s18, 1
      %p35 = por %p33, %p34
      %p36 = scmp.ne.s32.totalorder %s28, %s31
      %p37 = scmp.eq.s32.totalorder %s18, 0
      %p38 = por %p36, %p37
      %p39 = scmp.ne.s32.totalorder %s28, %s31
      %p40 = scmp.eq.s32.totalorder %s23, 1
      %p41 = por %p39, %p40
      %p42 = scmp.ne.s32.totalorder %s31, %s32
      %p43 = scmp.eq.s32.totalorder %s23, 0
      %p44 = por %p42, %p43
      %p45 = scmp.ne.s32.totalorder %s31, %s32
      %p46 = scmp.eq.s32.totalorder %s24, 1
      %p47 = por %p45, %p46
      %p49 = scmp.ne.s32.totalorder %s32, %s48
      %p50 = scmp.eq.s32.totalorder %s24, 0
      %p51 = por %p49, %p50
      %s52 = ssub.s32 %s18, %s25
      %p53 = scmp.eq.s32.totalorder %s52, 0
      %s55 = sadd.s32 %s54, 1
      %s56 = scalar_select %p53, %s54, %s55
      %p59 = pneg %p53
      %p60 = scmp.eq.s32.totalorder %s18, 1
      %p61 = por %p59, %p60
      %p62 = scmp.ne.s32.totalorder %s54, %s57
      %p63 = scmp.eq.s32.totalorder %s18, 0
      %p64 = por %p62, %p63
      %p65 = scmp.ne.s32.totalorder %s54, %s57
      %p66 = scmp.eq.s32.totalorder %s23, 1
      %p67 = por %p65, %p66
      %p68 = scmp.ne.s32.totalorder %s57, %s58
      %p69 = scmp.eq.s32.totalorder %s23, 0
      %p70 = por %p68, %p69
      %p71 = scmp.ne.s32.totalorder %s57, %s58
      %p72 = scmp.eq.s32.totalorder %s24, 1
      %p73 = por %p71, %p72
      %p75 = scmp.ne.s32.totalorder %s58, %s74
      %p76 = scmp.eq.s32.totalorder %s24, 0
      %p77 = por %p75, %p76
      %s79 = sadd.s32 %s78, 1
      %p82 = scmp.eq.s32.totalorder %s18, 1
      %p83 = scmp.ne.s32.totalorder %s78, %s80
      %p84 = scmp.eq.s32.totalorder %s18, 0
      %p85 = por %p83, %p84
      %p86 = scmp.ne.s32.totalorder %s78, %s80
      %p87 = scmp.eq.s32.totalorder %s23, 1
      %p88 = por %p86, %p87
      %p89 = scmp.ne.s32.totalorder %s80, %s81
      %p90 = scmp.eq.s32.totalorder %s23, 0
      %p91 = por %p89, %p90
      %p92 = scmp.ne.s32.totalorder %s80, %s81
      %p93 = scmp.eq.s32.totalorder %s24, 1
      %p94 = por %p92, %p93
      %p96 = scmp.ne.s32.totalorder %s81, %s95
      %p97 = scmp.eq.s32.totalorder %s24, 0
      %p98 = por %p96, %p97
      %s100 = sadd.s32 %s99, 1
      %p103 = scmp.eq.s32.totalorder %s18, 1
      %p104 = scmp.ne.s32.totalorder %s99, %s101
      %p105 = scmp.eq.s32.totalorder %s18, 0
      %p106 = por %p104, %p105
      %p107 = scmp.ne.s32.totalorder %s99, %s101
      %p108 = scmp.eq.s32.totalorder %s23, 1
      %p109 = por %p107, %p108
      %p110 = scmp.ne.s32.totalorder %s101, %s102
      %p111 = scmp.eq.s32.totalorder %s23, 0
      %p112 = por %p110, %p111
      %p113 = scmp.ne.s32.totalorder %s101, %s102
      %p114 = scmp.eq.s32.totalorder %s24, 1
      %p115 = por %p113, %p114
      %p117 = scmp.ne.s32.totalorder %s102, %s116
      %p118 = scmp.eq.s32.totalorder %s24, 0
      %p119 = por %p117, %p118
      %s121 = sadd.s32 %s120, 1
      %p124 = scmp.eq.s32.totalorder %s18, 1
      %p125 = scmp.ne.s32.totalorder %s120, %s122
      %p126 = scmp.eq.s32.totalorder %s18, 0
      %p127 = por %p125, %p126
      %p128 = scmp.ne.s32.totalorder %s120, %s122
      %p129 = scmp.eq.s32.totalorder %s23, 1
      %p130 = por %p128, %p129
      %p131 = scmp.ne.s32.totalorder %s122, %s123
      %p132 = scmp.eq.s32.totalorder %s23, 0
      %p133 = por %p131, %p132
      %p134 = scmp.ne.s32.totalorder %s122, %s123
      %p135 = scmp.eq.s32.totalorder %s24, 1
      %p136 = por %p134, %p135
      %p138 = scmp.ne.s32.totalorder %s123, %s137
      %p139 = scmp.eq.s32.totalorder %s24, 0
      %p140 = por %p138, %p139
      %s142 = sadd.s32 %s141, 1
      %p145 = scmp.eq.s32.totalorder %s18, 1
      %p146 = scmp.ne.s32.totalorder %s141, %s143
      %p147 = scmp.eq.s32.totalorder %s18, 0
      %p148 = por %p146, %p147
      %p149 = scmp.ne.s32.totalorder %s141, %s143
      %p150 = scmp.eq.s32.totalorder %s23, 1
      %p151 = por %p149, %p150
      %p152 = scmp.ne.s32.totalorder %s143, %s144
      %p153 = scmp.eq.s32.totalorder %s23, 0
      %p154 = por %p152, %p153
      %p155 = scmp.ne.s32.totalorder %s143, %s144
      %p156 = scmp.eq.s32.totalorder %s24, 1
      %p157 = por %p155, %p156
      %p159 = scmp.ne.s32.totalorder %s144, %s158
      %p160 = scmp.eq.s32.totalorder %s24, 0
      %p161 = por %p159, %p160
      %s163 = sadd.s32 %s162, 1
      %p166 = scmp.eq.s32.totalorder %s18, 1
      %p167 = scmp.ne.s32.totalorder %s162, %s164
      %p168 = scmp.eq.s32.totalorder %s18, 0
      %p169 = por %p167, %p168
      %p170 = scmp.ne.s32.totalorder %s162, %s164
      %p171 = scmp.eq.s32.totalorder %s23, 1
      %p172 = por %p170, %p171
      %p173 = scmp.ne.s32.totalorder %s164, %s165
      %p174 = scmp.eq.s32.totalorder %s23, 0
      %p175 = por %p173, %p174
      %p176 = scmp.ne.s32.totalorder %s164, %s165
      %p177 = scmp.eq.s32.totalorder %s24, 1
      %p178 = por %p176, %p177
      %p180 = scmp.ne.s32.totalorder %s165, %s179
      %p181 = scmp.eq.s32.totalorder %s24, 0
      %p182 = por %p180, %p181
      %s184 = sadd.s32 %s183, 1
      %p187 = scmp.eq.s32.totalorder %s18, 1
      %p188 = scmp.ne.s32.totalorder %s183, %s185
      %p189 = scmp.eq.s32.totalorder %s18, 0
      %p190 = por %p188, %p189
      %p191 = scmp.ne.s32.totalorder %s183, %s185
      %p192 = scmp.eq.s32.totalorder %s23, 1
      %p193 = por %p191, %p192
      %p194 = scmp.ne.s32.totalorder %s185, %s186
      %p195 = scmp.eq.s32.totalorder %s23, 0
      %p196 = por %p194, %p195
      %p197 = scmp.ne.s32.totalorder %s185, %s186
      %p198 = scmp.eq.s32.totalorder %s24, 1
      %p199 = por %p197, %p198
      %p201 = scmp.ne.s32.totalorder %s186, %s200
      %p202 = scmp.eq.s32.totalorder %s24, 0
      %p203 = por %p201, %p202
      %s205 = sadd.s32 %s204, 1
      %p208 = scmp.eq.s32.totalorder %s18, 1
      %p209 = scmp.ne.s32.totalorder %s204, %s206
      %p210 = scmp.eq.s32.totalorder %s18, 0
      %p211 = por %p209, %p210
      %p212 = scmp.ne.s32.totalorder %s204, %s206
      %p213 = scmp.eq.s32.totalorder %s23, 1
      %p214 = por %p212, %p213
      %p215 = scmp.ne.s32.totalorder %s206, %s207
      %p216 = scmp.eq.s32.totalorder %s23, 0
      %p217 = por %p215, %p216
      %p218 = scmp.ne.s32.totalorder %s206, %s207
      %p219 = scmp.eq.s32.totalorder %s24, 1
      %p220 = por %p218, %p219
      %p222 = scmp.ne.s32.totalorder %s207, %s221
      %p223 = scmp.eq.s32.totalorder %s24, 0
      %p224 = por %p222, %p223
      %s226 = sadd.s32 %s225, 1
      %p229 = scmp.eq.s32.totalorder %s18, 1
      %p230 = scmp.ne.s32.totalorder %s225, %s227
      %p231 = scmp.eq.s32.totalorder %s18, 0
      %p232 = por %p230, %p231
      %p233 = scmp.ne.s32.totalorder %s225, %s227
      %p234 = scmp.eq.s32.totalorder %s23, 1
      %p235 = por %p233, %p234
      %p236 = scmp.ne.s32.totalorder %s227, %s228
      %p237 = scmp.eq.s32.totalorder %s23, 0
      %p238 = por %p236, %p237
      %p239 = scmp.ne.s32.totalorder %s227, %s228
      %p240 = scmp.eq.s32.totalorder %s24, 1
      %p241 = por %p239, %p240
      %p243 = scmp.ne.s32.totalorder %s228, %s242
      %p244 = scmp.eq.s32.totalorder %s24, 0
      %p245 = por %p243, %p244
      %s247 = sadd.s32 %s246, 1
      %p250 = scmp.eq.s32.totalorder %s18, 1
      %p251 = scmp.ne.s32.totalorder %s246, %s248
      %p252 = scmp.eq.s32.totalorder %s18, 0
      %p253 = por %p251, %p252
      %p254 = scmp.ne.s32.totalorder %s246, %s248
      %p255 = scmp.eq.s32.totalorder %s23, 1
      %p256 = por %p254, %p255
      %p257 = scmp.ne.s32.totalorder %s248, %s249
      %p258 = scmp.eq.s32.totalorder %s23, 0
      %p259 = por %p257, %p258
      %p260 = scmp.ne.s32.totalorder %s248, %s249
      %p261 = scmp.eq.s32.totalorder %s24, 1
      %p262 = por %p260, %p261
      %p264 = scmp.ne.s32.totalorder %s249, %s263
      %p265 = scmp.eq.s32.totalorder %s24, 0
      %p266 = por %p264, %p265
      %s267 = ssub.s32 %s18, %s25
      %p268 = scmp.eq.s32.totalorder %s267, 0
      %s270 = sadd.s32 %s269, 1
      %s271 = scalar_select %p268, %s269, %s270
      %p274 = pneg %p268
      %p275 = scmp.eq.s32.totalorder %s18, 1
      %p276 = por %p274, %p275
      %p277 = scmp.ne.s32.totalorder %s269, %s272
      %p278 = scmp.eq.s32.totalorder %s18, 0
      %p279 = por %p277, %p278
      %p280 = scmp.ne.s32.totalorder %s269, %s272
      %p281 = scmp.eq.s32.totalorder %s23, 1
      %p282 = por %p280, %p281
      %p283 = scmp.ne.s32.totalorder %s272, %s273
      %p284 = scmp.eq.s32.totalorder %s23, 0
      %p285 = por %p283, %p284
      %p286 = scmp.ne.s32.totalorder %s272, %s273
      %p287 = scmp.eq.s32.totalorder %s24, 1
      %p288 = por %p286, %p287
      %p290 = scmp.ne.s32.totalorder %s273, %s289
      %p291 = scmp.eq.s32.totalorder %s24, 0
      %p292 = por %p290, %p291
      %p293 = scmp.le.s32.totalorder 1, %s18
      %p294 = scmp.lt.s32.totalorder %s18, 3
      %p295 = pnand %p293, %p294
      %p296 = pneg %p295
      // Predicated region
      $region9: #{spatial_att_forward.1} parent=5 // pred_check
        _
      $region10: #{spatial_att_forward.1} parent=5 // pred_check_branch
        %298 = sbr.rel (%p295) target = $region12
      $region11: #{spatial_att_forward.1} parent=5 // pred_region
        %s299 = ssub.s32 %s18, 1
        // Predicated region
        $region13: #{spatial_att_forward.1} parent=11 // pred_check
          %p300 = pneg %p91
        $region14: #{spatial_att_forward.1} parent=11 // pred_check_branch
          %302 = sbr.rel (%p300) target = $region16
        $region15: #{spatial_att_forward.1} parent=11 // pred_region
          _
        $region16: #{spatial_att_forward.1} parent=11 // pred_fallthru
          _
        // Predicated region
        $region17: #{spatial_att_forward.1} parent=11 // pred_check
          %p303 = pneg %p112
        $region18: #{spatial_att_forward.1} parent=11 // pred_check_branch
          %305 = sbr.rel (%p303) target = $region20
        $region19: #{spatial_att_forward.1} parent=11 // pred_region
          _
        $region20: #{spatial_att_forward.1} parent=11 // pred_fallthru
          _
        // Predicated region
        $region21: #{spatial_att_forward.1} parent=11 // pred_check
          %p306 = pneg %p133
        $region22: #{spatial_att_forward.1} parent=11 // pred_check_branch
          %308 = sbr.rel (%p306) target = $region24
        $region23: #{spatial_att_forward.1} parent=11 // pred_region
          _
        $region24: #{spatial_att_forward.1} parent=11 // pred_fallthru
          _
        // Predicated region
        $region25: #{spatial_att_forward.1} parent=11 // pred_check
          %p309 = pneg %p154
        $region26: #{spatial_att_forward.1} parent=11 // pred_check_branch
          %311 = sbr.rel (%p309) target = $region28
        $region27: #{spatial_att_forward.1} parent=11 // pred_region
          _
        $region28: #{spatial_att_forward.1} parent=11 // pred_fallthru
          _
        // Predicated region
        $region29: #{spatial_att_forward.1} parent=11 // pred_check
          %p312 = pneg %p175
        $region30: #{spatial_att_forward.1} parent=11 // pred_check_branch
          %314 = sbr.rel (%p312) target = $region32
        $region31: #{spatial_att_forward.1} parent=11 // pred_region
          _
        $region32: #{spatial_att_forward.1} parent=11 // pred_fallthru
          _
        // Predicated region
        $region33: #{spatial_att_forward.1} parent=11 // pred_check
          %p315 = pneg %p196
        $region34: #{spatial_att_forward.1} parent=11 // pred_check_branch
          %317 = sbr.rel (%p315) target = $region36
        $region35: #{spatial_att_forward.1} parent=11 // pred_region
          _
        $region36: #{spatial_att_forward.1} parent=11 // pred_fallthru
          _
        // Predicated region
        $region37: #{spatial_att_forward.1} parent=11 // pred_check
          %p318 = pneg %p217
        $region38: #{spatial_att_forward.1} parent=11 // pred_check_branch
          %320 = sbr.rel (%p318) target = $region40
        $region39: #{spatial_att_forward.1} parent=11 // pred_region
          _
        $region40: #{spatial_att_forward.1} parent=11 // pred_fallthru
          _
        // Predicated region
        $region41: #{spatial_att_forward.1} parent=11 // pred_check
          %p321 = pneg %p238
        $region42: #{spatial_att_forward.1} parent=11 // pred_check_branch
          %323 = sbr.rel (%p321) target = $region44
        $region43: #{spatial_att_forward.1} parent=11 // pred_region
          _
        $region44: #{spatial_att_forward.1} parent=11 // pred_fallthru
          _
        // Predicated region
        $region45: #{spatial_att_forward.1} parent=11 // pred_check
          %p324 = pneg %p259
        $region46: #{spatial_att_forward.1} parent=11 // pred_check_branch
          %326 = sbr.rel (%p324) target = $region48
        $region47: #{spatial_att_forward.1} parent=11 // pred_region
          %328 = vsyncadd [#allocation5], 0
          %s330 = sshll.u32 %s10, 4
          %s331 = int_to_ptr.vmem [resolvable:$true] %s330
          %333 = dma.vmem_to_smem %s331, 16, [#allocation4], [#allocation5]
        $region48: #{spatial_att_forward.1} parent=11 // pred_fallthru
          _
      $region12: #{spatial_att_forward.1} parent=5 // pred_fallthru
        _
      %p334 = scmp.lt.s32.totalorder %s18, 2
      // Predicated region
      $region49: #{spatial_att_forward.1} parent=5 // pred_check
        %p335 = pneg %p334
      $region50: #{spatial_att_forward.1} parent=5 // pred_check_branch
        %337 = sbr.rel (%p335) target = $region52
      $region51: #{spatial_att_forward.1} parent=5 // pred_region
        // Predicated region
        $region53: #{spatial_att_forward.1} parent=51 // pred_check
          %p338 = pneg %p38
        $region54: #{spatial_att_forward.1} parent=51 // pred_check_branch
          %340 = sbr.rel (%p338) target = $region56
        $region55: #{spatial_att_forward.1} parent=51 // pred_region
          %p341 = scmp.lt.s32.totalorder %s18, 1
          %s342 = scalar_select %p341, %s18, 1
          %s343 = smul.addr %s342, 18
          %s344 = smul.addr %s343, 8
          %s345 = scalar_lea.vmem %s0, %s344
        $region56: #{spatial_att_forward.1} parent=51 // pred_fallthru
          _
        // Predicated region
        $region57: #{spatial_att_forward.1} parent=51 // pred_check
          %p346 = pneg %p64
        $region58: #{spatial_att_forward.1} parent=51 // pred_check_branch
          %348 = sbr.rel (%p346) target = $region60
        $region59: #{spatial_att_forward.1} parent=51 // pred_region
          %p349 = scmp.lt.s32.totalorder %s18, 1
          %s350 = scalar_select %p349, %s18, 1
          %s351 = smul.addr %s350, 32
          %s352 = smul.addr %s351, 8
          %s353 = scalar_lea.vmem %s1, %s352
        $region60: #{spatial_att_forward.1} parent=51 // pred_fallthru
          _
      $region52: #{spatial_att_forward.1} parent=5 // pred_fallthru
        _
      %p354 = scmp.le.s32.totalorder 1, %s18
      %p355 = scmp.lt.s32.totalorder %s18, 3
      %p356 = pnand %p354, %p355
      %p357 = pneg %p356
      // Predicated region
      $region61: #{spatial_att_forward.1} parent=5 // pred_check
        _
      $region62: #{spatial_att_forward.1} parent=5 // pred_check_branch
        %359 = sbr.rel (%p356) target = $region64
      $region63: #{spatial_att_forward.1} parent=5 // pred_region
        %s360 = ssub.s32 %s18, 1
        // Predicated region
        $region65: #{spatial_att_forward.1} parent=63 // pred_check
          %p361 = pneg %p259
        $region66: #{spatial_att_forward.1} parent=63 // pred_check_branch
          %363 = sbr.rel (%p361) target = $region68
        $region67: #{spatial_att_forward.1} parent=63 // pred_region
          %365 = dma.done [#allocation5], 16
        $region68: #{spatial_att_forward.1} parent=63 // pred_fallthru
          _
        %366 = sfence
        %p367 = scmp.lt.s32.totalorder %s23, 1
        %s368 = scalar_select %p367, %s23, 1
        %s369 = smul.addr %s368, 18
        %s370 = smul.addr %s369, 8
        %s371 = scalar_lea.vmem %s0, %s370
        %p372 = pneg %p44
        %p373 = pneg %p41
        %p374 = scmp.lt.s32.totalorder %s23, 1
        %s375 = scalar_select %p374, %s23, 1
        %s376 = smul.addr %s375, 32
        %s377 = smul.addr %s376, 8
        %s378 = scalar_lea.vmem %s1, %s377
        %p379 = pneg %p70
        %p380 = pneg %p67
        %p381 = pneg %p91
        %p382 = pneg %p88
        %p383 = pneg %p112
        %p384 = pneg %p109
        %p385 = pneg %p133
        %p386 = pneg %p130
        %p387 = pneg %p154
        %p388 = pneg %p151
        %p389 = pneg %p175
        %p390 = pneg %p172
        %p391 = pneg %p196
        %p392 = pneg %p193
        %p393 = pneg %p217
        %p394 = pneg %p214
        %p395 = pneg %p238
        %p396 = pneg %p235
        %p397 = pneg %p259
        %p398 = pneg %p256
        %p399 = pneg %p285
        %p400 = pneg %p282
        %p401 = scmp.lt.s32.totalorder %s23, 1
        %s402 = scalar_select %p401, %s23, 1
        %s403 = smul.addr %s402, 8
        %s404 = smul.addr %s403, 8
        %s405 = scalar_lea.vmem %s11, %s404
        %p406 = scmp.lt.s32.totalorder %s23, 1
        %s407 = scalar_select %p406, %s23, 1
        %s408 = smul.addr %s407, 18
        %s409 = smul.addr %s408, 8
        %s410 = scalar_lea.vmem %s0, %s409
        %p411 = scmp.lt.s32.totalorder %s23, 1
        %s412 = scalar_select %p411, %s23, 1
        %s413 = smul.addr %s412, 32
        %s414 = smul.addr %s413, 8
        %s415 = scalar_lea.vmem %s1, %s414
        %p416 = scmp.lt.s32.totalorder %s23, 1
        %s417 = scalar_select %p416, %s23, 1
        %s418 = smul.addr %s417, 8
        %s419 = smul.addr %s418, 8
        %s420 = scalar_lea.vmem %s11, %s419
        %s422 = sld [smem:[#allocation4]]
        %s423 = sld [smem:[#allocation4 + $0x1]]
        %s424 = sld [smem:[#allocation4 + $0x2]]
        %vm425 = vcmask 31744
        %426 = vst.msk [vmem:[#allocation2] sm:$0xff] %vm425, 0.0
        %vm427 = vcmask 24576
        %428 = vst.msk [vmem:[#allocation2 + $0x8] sm:$0x1] %vm427, 0.0
        %429 = vst.msk [vmem:[#allocation2 + $0x90] sm:$0xff] %vm425, 0.0
        %430 = vst.msk [vmem:[#allocation2 + $0x98] sm:$0x1] %vm427, 0.0
        %431 = vst.msk [vmem:[#allocation2 + $0x120] sm:$0xff] %vm425, 0.0
        %432 = vst.msk [vmem:[#allocation2 + $0x128] sm:$0x1] %vm427, 0.0
        %433 = vst.msk [vmem:[#allocation2 + $0x1b0] sm:$0xff] %vm425, 0.0
        %434 = vst.msk [vmem:[#allocation2 + $0x1b8] sm:$0x1] %vm427, 0.0
        %435 = vst.msk [vmem:[#allocation2] sm:$0x1] %vm427, 0.0
        %436 = vst.msk [vmem:[#allocation2 + $0x10] sm:$0x1] %vm427, 0.0
        %437 = vst.msk [vmem:[#allocation2 + $0x20] sm:$0x1] %vm427, 0.0
        %438 = vst.msk [vmem:[#allocation2 + $0x30] sm:$0x1] %vm427, 0.0
        %439 = vst.msk [vmem:[#allocation2 + $0x40] sm:$0x1] %vm427, 0.0
        %440 = vst.msk [vmem:[#allocation2 + $0x50] sm:$0x1] %vm427, 0.0
        %441 = vst.msk [vmem:[#allocation2 + $0x60] sm:$0x1] %vm427, 0.0
        %442 = vst.msk [vmem:[#allocation2 + $0x70] sm:$0x1] %vm427, 0.0
        %443 = vst.msk [vmem:[#allocation2 + $0x80] sm:$0x1] %vm427, 0.0
        %444 = vst.msk [vmem:[#allocation2 + $0x90] sm:$0x1] %vm427, 0.0
        %445 = vst.msk [vmem:[#allocation2 + $0xa0] sm:$0x1] %vm427, 0.0
        %446 = vst.msk [vmem:[#allocation2 + $0xb0] sm:$0x1] %vm427, 0.0
        %447 = vst.msk [vmem:[#allocation2 + $0xc0] sm:$0x1] %vm427, 0.0
        %448 = vst.msk [vmem:[#allocation2 + $0xd0] sm:$0x1] %vm427, 0.0
        %449 = vst.msk [vmem:[#allocation2 + $0xe0] sm:$0x1] %vm427, 0.0
        %450 = vst.msk [vmem:[#allocation2 + $0xf0] sm:$0x1] %vm427, 0.0
        %451 = vst.msk [vmem:[#allocation2 + $0x100] sm:$0x1] %vm427, 0.0
        %452 = vst.msk [vmem:[#allocation2 + $0x110] sm:$0x1] %vm427, 0.0
        %453 = vst.msk [vmem:[#allocation2 + $0x120] sm:$0x1] %vm427, 0.0
        %454 = vst.msk [vmem:[#allocation2 + $0x130] sm:$0x1] %vm427, 0.0
        %455 = vst.msk [vmem:[#allocation2 + $0x140] sm:$0x1] %vm427, 0.0
        %456 = vst.msk [vmem:[#allocation2 + $0x150] sm:$0x1] %vm427, 0.0
        %457 = vst.msk [vmem:[#allocation2 + $0x160] sm:$0x1] %vm427, 0.0
        %458 = vst.msk [vmem:[#allocation2 + $0x170] sm:$0x1] %vm427, 0.0
        %459 = vst.msk [vmem:[#allocation2 + $0x180] sm:$0x1] %vm427, 0.0
        %460 = vst.msk [vmem:[#allocation2 + $0x190] sm:$0x1] %vm427, 0.0
        %461 = vst.msk [vmem:[#allocation2 + $0x1a0] sm:$0x1] %vm427, 0.0
        %462 = vst.msk [vmem:[#allocation2 + $0x1b0] sm:$0x1] %vm427, 0.0
        %463 = vst.msk [vmem:[#allocation2 + $0x1c0] sm:$0x1] %vm427, 0.0
        %464 = vst.msk [vmem:[#allocation2 + $0x1d0] sm:$0x1] %vm427, 0.0
        %465 = vst.msk [vmem:[#allocation2 + $0x1e0] sm:$0x1] %vm427, 0.0
        %466 = vst.msk [vmem:[#allocation2 + $0x1f0] sm:$0x1] %vm427, 0.0
        %467 = vst.msk [vmem:[#allocation2 + $0x200] sm:$0x1] %vm427, 0.0
        %468 = vst.msk [vmem:[#allocation2 + $0x210] sm:$0x1] %vm427, 0.0
        %469 = vst.msk [vmem:[#allocation2 + $0x220] sm:$0x1] %vm427, 0.0
        %470 = vst.msk [vmem:[#allocation2 + $0x230] sm:$0x1] %vm427, 0.0
        %s471 = scalar_lea.vmem [#allocation3], 128
        %472 = vst.msk [vmem:[%s471] sm:$0xff] %vm425, 0.0
        %473 = vst.msk [vmem:[%s471 + $0x8] sm:$0x1] %vm427, 0.0
        %474 = vst.msk [vmem:[#allocation3 + $0x8] sm:$0x1] %vm427, 0.0
        %475 = vst.msk [vmem:[#allocation3 + $0x18] sm:$0x1] %vm427, 0.0
        %476 = vst.msk [vmem:[#allocation3 + $0x28] sm:$0x1] %vm427, 0.0
        %477 = vst.msk [vmem:[#allocation3 + $0x38] sm:$0x1] %vm427, 0.0
        %478 = vst.msk [vmem:[#allocation3 + $0x48] sm:$0x1] %vm427, 0.0
        %479 = vst.msk [vmem:[#allocation3 + $0x58] sm:$0x1] %vm427, 0.0
        %480 = vst.msk [vmem:[#allocation3 + $0x68] sm:$0x1] %vm427, 0.0
        %481 = vst.msk [vmem:[#allocation3 + $0x78] sm:$0x1] %vm427, 0.0
        %482 = vst.msk [vmem:[#allocation3 + $0x88] sm:$0x1] %vm427, 0.0
        %v483 = vld [vmem:[%s415] sm:$0xff]
        %v484 = vld [vmem:[%s415 + $0x8] sm:$0xff]
        %v485 = vld [vmem:[%s415 + $0x10] sm:$0xff]
        %v486 = vld [vmem:[%s415 + $0x18] sm:$0xff]
        %v487 = vld [vmem:[%s415 + $0x20] sm:$0xff]
        %v488 = vld [vmem:[%s415 + $0x28] sm:$0xff]
        %v489 = vld [vmem:[%s415 + $0x30] sm:$0xff]
        %v490 = vld [vmem:[%s415 + $0x38] sm:$0xff]
        %v491 = vld [vmem:[%s415 + $0x40] sm:$0xff]
        %v492 = vld [vmem:[%s415 + $0x48] sm:$0xff]
        %v493 = vld [vmem:[%s415 + $0x50] sm:$0xff]
        %v494 = vld [vmem:[%s415 + $0x58] sm:$0xff]
        %v495 = vld [vmem:[%s415 + $0x60] sm:$0xff]
        %v496 = vld [vmem:[%s415 + $0x68] sm:$0xff]
        %v497 = vld [vmem:[%s415 + $0x70] sm:$0xff]
        %v498 = vld [vmem:[%s415 + $0x78] sm:$0xff]
        %v499 = vld [vmem:[%s415 + $0x80] sm:$0xff]
        %v500 = vld [vmem:[%s415 + $0x88] sm:$0xff]
        %v501 = vld [vmem:[%s415 + $0x90] sm:$0xff]
        %v502 = vld [vmem:[%s415 + $0x98] sm:$0xff]
        %v503 = vld [vmem:[%s415 + $0xa0] sm:$0xff]
        %v504 = vld [vmem:[%s415 + $0xa8] sm:$0xff]
        %v505 = vld [vmem:[%s415 + $0xb0] sm:$0xff]
        %v506 = vld [vmem:[%s415 + $0xb8] sm:$0xff]
        %v507 = vld [vmem:[%s415 + $0xc0] sm:$0xff]
        %v508 = vld [vmem:[%s415 + $0xc8] sm:$0xff]
        %v509 = vld [vmem:[%s415 + $0xd0] sm:$0xff]
        %v510 = vld [vmem:[%s415 + $0xd8] sm:$0xff]
        %v511 = vld [vmem:[%s415 + $0xe0] sm:$0xff]
        %v512 = vld [vmem:[%s415 + $0xe8] sm:$0xff]
        %v513 = vld [vmem:[%s415 + $0xf0] sm:$0xff]
        %v514 = vld [vmem:[%s415 + $0xf8] sm:$0xff]
        %v515 = vld [vmem:[%s410] sm:$0xff]
        %v516 = vld [vmem:[%s410 + $0x10] sm:$0xff]
        %v517 = vld [vmem:[%s410 + $0x20] sm:$0xff]
        %v518 = vld [vmem:[%s410 + $0x30] sm:$0xff]
        %v519 = vld [vmem:[%s410 + $0x40] sm:$0xff]
        %v520 = vld [vmem:[%s410 + $0x50] sm:$0xff]
        %v521 = vld [vmem:[%s410 + $0x60] sm:$0xff]
        %v522 = vld [vmem:[%s410 + $0x70] sm:$0xff]
        %v523 = vld [vmem:[%s2] sm:$0x3]
        %v524 = vpack.c.bf16 %v516, %v515
        %v525 = vpack.c.bf16 %v518, %v517
        %v526 = vpack.c.bf16 %v520, %v519
        %v527 = vpack.c.bf16 %v522, %v521
        %v528 = vld [vmem:[%s410 + $0x1] sm:$0xff]
        %v529 = vld [vmem:[%s410 + $0x11] sm:$0xff]
        %v530 = vld [vmem:[%s410 + $0x21] sm:$0xff]
        %v531 = vld [vmem:[%s410 + $0x31] sm:$0xff]
        %v532 = vld [vmem:[%s410 + $0x41] sm:$0xff]
        %v533 = vld [vmem:[%s410 + $0x51] sm:$0xff]
        %v534 = vld [vmem:[%s410 + $0x61] sm:$0xff]
        %v535 = vld [vmem:[%s410 + $0x71] sm:$0xff]
        %v536 = vld [vmem:[%s2] sm:$0xc]
        %v537 = vpack.c.bf16 %v529, %v528
        %v538 = vpack.c.bf16 %v531, %v530
        %v539 = vpack.c.bf16 %v533, %v532
        %v540 = vpack.c.bf16 %v535, %v534
        %v542 = vunpack.c.l.b16 %v536
        %v543 = vpack.c.b16 %v542, %v542
        %v544 = vrot.slane %v543, 2
        %v546 = vsel %vm425, %v537, 0
        %v549 = vsel %vm425, %v538, 0
        %v552 = vsel %vm425, %v539, 0
        %v555 = vsel %vm425, %v540, 0
        %vm557 = vcmask 1041408
        %v559 = vsel %vm557, %v544, 0
        %561 = vmatpush.bf16.msra.mxu0 0
        %562 = vmatpush.bf16.msra.mxu0 0
        %563 = vmatpush.bf16.msra.mxu0 0
        %564 = vmatpush.bf16.msra.mxu0 0
        %565 = vmatpush.bf16.msra.mxu0 0
        %566 = vmatpush.bf16.msra.mxu0 0
        %567 = vmatpush.bf16.msra.mxu0 0
        %568 = vmatpush.bf16.msra.mxu0 %v559
        %569 = vmatmul.bf16.gmra.mxu0 %v546
        %v570 = vpop.f32.mrf.mxu0
        %v571 = vadd.f32 0.0, %v570
        %v572 = vpop.f32.mrf.mxu0
        %v573 = vadd.f32 0.0, %v572
        %574 = vmatmul.bf16.gmra.mxu0 %v549
        %v575 = vpop.f32.mrf.mxu0
        %v576 = vadd.f32 0.0, %v575
        %v577 = vpop.f32.mrf.mxu0
        %v578 = vadd.f32 0.0, %v577
        %579 = vmatmul.bf16.gmra.mxu0 %v552
        %v580 = vpop.f32.mrf.mxu0
        %v581 = vadd.f32 0.0, %v580
        %v582 = vpop.f32.mrf.mxu0
        %v583 = vadd.f32 0.0, %v582
        %584 = vmatmul.bf16.gmra.mxu0 %v555
        %v585 = vpop.f32.mrf.mxu0
        %v586 = vadd.f32 0.0, %v585
        %v587 = vpop.f32.mrf.mxu0
        %v588 = vadd.f32 0.0, %v587
        %589 = vdwg.mxu0
        %v591 = vsel %vm425, %v524, 0
        %v594 = vsel %vm425, %v525, 0
        %v597 = vsel %vm425, %v526, 0
        %v600 = vsel %vm425, %v527, 0
        %v603 = vsel %vm557, %v523, 0
        %605 = vmatpush.bf16.msra.mxu0 0
        %606 = vmatpush.bf16.msra.mxu0 0
        %607 = vmatpush.bf16.msra.mxu0 0
        %608 = vmatpush.bf16.msra.mxu0 0
        %609 = vmatpush.bf16.msra.mxu0 0
        %610 = vmatpush.bf16.msra.mxu0 0
        %611 = vmatpush.bf16.msra.mxu0 0
        %612 = vmatpush.bf16.msra.mxu0 %v603
        %613 = vmatmul.bf16.gmra.mxu0 %v591
        %v614 = vpop.f32.mrf.mxu0
        %v615 = vadd.f32 %v571, %v614
        %v616 = vpop.f32.mrf.mxu0
        %v617 = vadd.f32 %v573, %v616
        %618 = vmatmul.bf16.gmra.mxu0 %v594
        %v619 = vpop.f32.mrf.mxu0
        %v620 = vadd.f32 %v576, %v619
        %v621 = vpop.f32.mrf.mxu0
        %v622 = vadd.f32 %v578, %v621
        %623 = vmatmul.bf16.gmra.mxu0 %v597
        %v624 = vpop.f32.mrf.mxu0
        %v625 = vadd.f32 %v581, %v624
        %v626 = vpop.f32.mrf.mxu0
        %v627 = vadd.f32 %v583, %v626
        %628 = vmatmul.bf16.gmra.mxu0 %v600
        %v629 = vpop.f32.mrf.mxu0
        %v630 = vadd.f32 %v586, %v629
        %v631 = vpop.f32.mrf.mxu0
        %v632 = vadd.f32 %v588, %v631
        %633 = vdwg.mxu0
        %s634 = scalar_lea.vmem %s410, 16
        %v635 = vld [vmem:[%s634] sm:$0xff]
        %v636 = vld [vmem:[%s634 + $0x10] sm:$0xff]
        %v637 = vld [vmem:[%s634 + $0x20] sm:$0xff]
        %v638 = vld [vmem:[%s634 + $0x30] sm:$0xff]
        %v639 = vld [vmem:[%s634 + $0x40] sm:$0xff]
        %v640 = vld [vmem:[%s634 + $0x50] sm:$0xff]
        %v641 = vld [vmem:[%s634 + $0x60] sm:$0xff]
        %v642 = vld [vmem:[%s634 + $0x70] sm:$0xff]
        %v643 = vld [vmem:[%s2 + $0x4] sm:$0x3]
        %v644 = vpack.c.bf16 %v636, %v635
        %v645 = vpack.c.bf16 %v638, %v637
        %v646 = vpack.c.bf16 %v640, %v639
        %v647 = vpack.c.bf16 %v642, %v641
        %v649 = vsel %vm425, %v644, 0
        %v652 = vsel %vm425, %v645, 0
        %v655 = vsel %vm425, %v646, 0
        %v658 = vsel %vm425, %v647, 0
        %v661 = vsel %vm557, %v643, 0
        %663 = vmatpush.bf16.msra.mxu0 0
        %664 = vmatpush.bf16.msra.mxu0 0
        %665 = vmatpush.bf16.msra.mxu0 0
        %666 = vmatpush.bf16.msra.mxu0 0
        %667 = vmatpush.bf16.msra.mxu0 0
        %668 = vmatpush.bf16.msra.mxu0 0
        %669 = vmatpush.bf16.msra.mxu0 0
        %670 = vmatpush.bf16.msra.mxu0 %v661
        %671 = vmatmul.bf16.gmra.mxu0 %v649
        %v672 = vpop.f32.mrf.mxu0
        %v673 = vadd.f32 0.0, %v672
        %v674 = vpop.f32.mrf.mxu0
        %v675 = vadd.f32 0.0, %v674
        %676 = vmatmul.bf16.gmra.mxu0 %v652
        %v677 = vpop.f32.mrf.mxu0
        %v678 = vadd.f32 0.0, %v677
        %v679 = vpop.f32.mrf.mxu0
        %v680 = vadd.f32 0.0, %v679
        %681 = vmatmul.bf16.gmra.mxu0 %v655
        %v682 = vpop.f32.mrf.mxu0
        %v683 = vadd.f32 0.0, %v682
        %v684 = vpop.f32.mrf.mxu0
        %v685 = vadd.f32 0.0, %v684
        %686 = vmatmul.bf16.gmra.mxu0 %v658
        %v687 = vpop.f32.mrf.mxu0
        %v688 = vadd.f32 0.0, %v687
        %v689 = vpop.f32.mrf.mxu0
        %v690 = vadd.f32 0.0, %v689
        %691 = vdwg.mxu0
        %v692 = vadd.f32 %v615, %v673
        %v693 = vadd.f32 %v617, %v675
        %v694 = vadd.f32 %v620, %v678
        %v695 = vadd.f32 %v622, %v680
        %v696 = vadd.f32 %v625, %v683
        %v697 = vadd.f32 %v627, %v685
        %v698 = vadd.f32 %v630, %v688
        %v699 = vadd.f32 %v632, %v690
        %v700 = vld [vmem:[%s634 + $0x1] sm:$0xff]
        %v701 = vld [vmem:[%s634 + $0x11] sm:$0xff]
        %v702 = vld [vmem:[%s634 + $0x21] sm:$0xff]
        %v703 = vld [vmem:[%s634 + $0x31] sm:$0xff]
        %v704 = vld [vmem:[%s634 + $0x41] sm:$0xff]
        %v705 = vld [vmem:[%s634 + $0x51] sm:$0xff]
        %v706 = vld [vmem:[%s634 + $0x61] sm:$0xff]
        %v707 = vld [vmem:[%s634 + $0x71] sm:$0xff]
        %v708 = vld [vmem:[%s2 + $0x4] sm:$0xc]
        %v709 = vpack.c.bf16 %v701, %v700
        %v710 = vpack.c.bf16 %v703, %v702
        %v711 = vpack.c.bf16 %v705, %v704
        %v712 = vpack.c.bf16 %v707, %v706
        %v714 = vunpack.c.l.b16 %v708
        %v715 = vpack.c.b16 %v714, %v714
        %v716 = vrot.slane %v715, 2
        %v718 = vsel %vm425, %v709, 0
        %v721 = vsel %vm425, %v710, 0
        %v724 = vsel %vm425, %v711, 0
        %v727 = vsel %vm425, %v712, 0
        %v730 = vsel %vm557, %v716, 0
        %732 = vmatpush.bf16.msra.mxu0 0
        %733 = vmatpush.bf16.msra.mxu0 0
        %734 = vmatpush.bf16.msra.mxu0 0
        %735 = vmatpush.bf16.msra.mxu0 0
        %736 = vmatpush.bf16.msra.mxu0 0
        %737 = vmatpush.bf16.msra.mxu0 0
        %738 = vmatpush.bf16.msra.mxu0 0
        %739 = vmatpush.bf16.msra.mxu0 %v730
        %740 = vmatmul.bf16.gmra.mxu0 %v718
        %v741 = vpop.f32.mrf.mxu0
        %v742 = vadd.f32 0.0, %v741
        %v743 = vpop.f32.mrf.mxu0
        %v744 = vadd.f32 0.0, %v743
        %745 = vmatmul.bf16.gmra.mxu0 %v721
        %v746 = vpop.f32.mrf.mxu0
        %v747 = vadd.f32 0.0, %v746
        %v748 = vpop.f32.mrf.mxu0
        %v749 = vadd.f32 0.0, %v748
        %750 = vmatmul.bf16.gmra.mxu0 %v724
        %v751 = vpop.f32.mrf.mxu0
        %v752 = vadd.f32 0.0, %v751
        %v753 = vpop.f32.mrf.mxu0
        %v754 = vadd.f32 0.0, %v753
        %755 = vmatmul.bf16.gmra.mxu0 %v727
        %v756 = vpop.f32.mrf.mxu0
        %v757 = vadd.f32 0.0, %v756
        %v758 = vpop.f32.mrf.mxu0
        %v759 = vadd.f32 0.0, %v758
        %760 = vdwg.mxu0
        %v761 = vadd.f32 %v692, %v742
        %v762 = vadd.f32 %v693, %v744
        %v763 = vadd.f32 %v694, %v747
        %v764 = vadd.f32 %v695, %v749
        %v765 = vadd.f32 %v696, %v752
        %v766 = vadd.f32 %v697, %v754
        %v767 = vadd.f32 %v698, %v757
        %v768 = vadd.f32 %v699, %v759
        %v769 = vld [vmem:[%s3] sm:$0x1]
        %v771 = vperm.slane %v769, 0
        %v773 = vadd.f32 %v761, %v771
        %v774 = vadd.f32 %v762, %v771
        %v775 = vadd.f32 %v763, %v771
        %v776 = vadd.f32 %v764, %v771
        %v777 = vadd.f32 %v765, %v771
        %v778 = vadd.f32 %v766, %v771
        %v779 = vadd.f32 %v767, %v771
        %v780 = vadd.f32 %v768, %v771
        %vm781 = vcmp.ge.f32.partialorder %v773, 0.0
        %vm782 = vcmp.ge.f32.partialorder %v774, 0.0
        %vm783 = vcmp.ge.f32.partialorder %v775, 0.0
        %vm784 = vcmp.ge.f32.partialorder %v776, 0.0
        %vm785 = vcmp.ge.f32.partialorder %v777, 0.0
        %vm786 = vcmp.ge.f32.partialorder %v778, 0.0
        %vm787 = vcmp.ge.f32.partialorder %v779, 0.0
        %vm788 = vcmp.ge.f32.partialorder %v780, 0.0
        %v789 = vstv %s422
        %v790 = vmul.f32 %v789, %v773
        %v791 = vmul.f32 %v789, %v774
        %v792 = vmul.f32 %v789, %v775
        %v793 = vmul.f32 %v789, %v776
        %v794 = vmul.f32 %v789, %v777
        %v795 = vmul.f32 %v789, %v778
        %v796 = vmul.f32 %v789, %v779
        %v797 = vmul.f32 %v789, %v780
        %v798 = vsel %vm781, %v773, %v790
        %v799 = vsel %vm782, %v774, %v791
        %v800 = vsel %vm783, %v775, %v792
        %v801 = vsel %vm784, %v776, %v793
        %v802 = vsel %vm785, %v777, %v794
        %v803 = vsel %vm786, %v778, %v795
        %v804 = vsel %vm787, %v779, %v796
        %v805 = vsel %vm788, %v780, %v797
        %814 = vrot.lane.b32.xlu0 %v798, 124
        %v815 = vpop.permute.xlu0 %814
        %816 = vrot.lane.b32.xlu0 %v799, 124
        %v817 = vpop.permute.xlu0 %816
        %818 = vrot.lane.b32.xlu0 %v800, 124
        %v819 = vpop.permute.xlu0 %818
        %820 = vrot.lane.b32.xlu0 %v801, 124
        %v821 = vpop.permute.xlu0 %820
        %822 = vrot.lane.b32.xlu0 %v802, 124
        %v823 = vpop.permute.xlu0 %822
        %824 = vrot.lane.b32.xlu0 %v803, 124
        %v825 = vpop.permute.xlu0 %824
        %826 = vrot.lane.b32.xlu0 %v804, 124
        %v827 = vpop.permute.xlu0 %826
        %828 = vrot.lane.b32.xlu0 %v805, 124
        %v829 = vpop.permute.xlu0 %828
        %838 = vrot.lane.b32.xlu0 %v798, 120
        %v839 = vpop.permute.xlu0 %838
        %840 = vrot.lane.b32.xlu0 %v799, 120
        %v841 = vpop.permute.xlu0 %840
        %842 = vrot.lane.b32.xlu0 %v800, 120
        %v843 = vpop.permute.xlu0 %842
        %844 = vrot.lane.b32.xlu0 %v801, 120
        %v845 = vpop.permute.xlu0 %844
        %846 = vrot.lane.b32.xlu0 %v802, 120
        %v847 = vpop.permute.xlu0 %846
        %848 = vrot.lane.b32.xlu0 %v803, 120
        %v849 = vpop.permute.xlu0 %848
        %850 = vrot.lane.b32.xlu0 %v804, 120
        %v851 = vpop.permute.xlu0 %850
        %852 = vrot.lane.b32.xlu0 %v805, 120
        %v853 = vpop.permute.xlu0 %852
        %862 = vrot.lane.b32.xlu0 %v798, 116
        %v863 = vpop.permute.xlu0 %862
        %864 = vrot.lane.b32.xlu0 %v799, 116
        %v865 = vpop.permute.xlu0 %864
        %866 = vrot.lane.b32.xlu0 %v800, 116
        %v867 = vpop.permute.xlu0 %866
        %868 = vrot.lane.b32.xlu0 %v801, 116
        %v869 = vpop.permute.xlu0 %868
        %870 = vrot.lane.b32.xlu0 %v802, 116
        %v871 = vpop.permute.xlu0 %870
        %872 = vrot.lane.b32.xlu0 %v803, 116
        %v873 = vpop.permute.xlu0 %872
        %874 = vrot.lane.b32.xlu0 %v804, 116
        %v875 = vpop.permute.xlu0 %874
        %876 = vrot.lane.b32.xlu0 %v805, 116
        %v877 = vpop.permute.xlu0 %876
        %918 = vrot.lane.b32.xlu0 %v483, 4
        %v919 = vpop.permute.xlu0 %918
        %920 = vrot.lane.b32.xlu0 %v484, 4
        %v921 = vpop.permute.xlu0 %920
        %922 = vrot.lane.b32.xlu0 %v485, 4
        %v923 = vpop.permute.xlu0 %922
        %924 = vrot.lane.b32.xlu0 %v486, 4
        %v925 = vpop.permute.xlu0 %924
        %926 = vrot.lane.b32.xlu0 %v487, 4
        %v927 = vpop.permute.xlu0 %926
        %928 = vrot.lane.b32.xlu0 %v488, 4
        %v929 = vpop.permute.xlu0 %928
        %930 = vrot.lane.b32.xlu0 %v489, 4
        %v931 = vpop.permute.xlu0 %930
        %932 = vrot.lane.b32.xlu0 %v490, 4
        %v933 = vpop.permute.xlu0 %932
        %934 = vrot.lane.b32.xlu0 %v491, 4
        %v935 = vpop.permute.xlu0 %934
        %936 = vrot.lane.b32.xlu0 %v492, 4
        %v937 = vpop.permute.xlu0 %936
        %938 = vrot.lane.b32.xlu0 %v493, 4
        %v939 = vpop.permute.xlu0 %938
        %940 = vrot.lane.b32.xlu0 %v494, 4
        %v941 = vpop.permute.xlu0 %940
        %942 = vrot.lane.b32.xlu0 %v495, 4
        %v943 = vpop.permute.xlu0 %942
        %944 = vrot.lane.b32.xlu0 %v496, 4
        %v945 = vpop.permute.xlu0 %944
        %946 = vrot.lane.b32.xlu0 %v497, 4
        %v947 = vpop.permute.xlu0 %946
        %948 = vrot.lane.b32.xlu0 %v498, 4
        %v949 = vpop.permute.xlu0 %948
        %950 = vrot.lane.b32.xlu0 %v499, 4
        %v951 = vpop.permute.xlu0 %950
        %952 = vrot.lane.b32.xlu0 %v500, 4
        %v953 = vpop.permute.xlu0 %952
        %954 = vrot.lane.b32.xlu0 %v501, 4
        %v955 = vpop.permute.xlu0 %954
        %956 = vrot.lane.b32.xlu0 %v502, 4
        %v957 = vpop.permute.xlu0 %956
        %958 = vrot.lane.b32.xlu0 %v503, 4
        %v959 = vpop.permute.xlu0 %958
        %960 = vrot.lane.b32.xlu0 %v504, 4
        %v961 = vpop.permute.xlu0 %960
        %962 = vrot.lane.b32.xlu0 %v505, 4
        %v963 = vpop.permute.xlu0 %962
        %964 = vrot.lane.b32.xlu0 %v506, 4
        %v965 = vpop.permute.xlu0 %964
        %966 = vrot.lane.b32.xlu0 %v507, 4
        %v967 = vpop.permute.xlu0 %966
        %968 = vrot.lane.b32.xlu0 %v508, 4
        %v969 = vpop.permute.xlu0 %968
        %970 = vrot.lane.b32.xlu0 %v509, 4
        %v971 = vpop.permute.xlu0 %970
        %972 = vrot.lane.b32.xlu0 %v510, 4
        %v973 = vpop.permute.xlu0 %972
        %974 = vrot.lane.b32.xlu0 %v511, 4
        %v975 = vpop.permute.xlu0 %974
        %976 = vrot.lane.b32.xlu0 %v512, 4
        %v977 = vpop.permute.xlu0 %976
        %978 = vrot.lane.b32.xlu0 %v513, 4
        %v979 = vpop.permute.xlu0 %978
        %980 = vrot.lane.b32.xlu0 %v514, 4
        %v981 = vpop.permute.xlu0 %980
        %v1014 = vsel %vm425, %v798, %v919
        %v1015 = vsel %vm425, %v799, %v921
        %v1016 = vsel %vm425, %v800, %v923
        %v1017 = vsel %vm425, %v801, %v925
        %v1018 = vsel %vm425, %v802, %v927
        %v1019 = vsel %vm425, %v803, %v929
        %v1020 = vsel %vm425, %v804, %v931
        %v1021 = vsel %vm425, %v805, %v933
        %v1022 = vsel %vm425, %v815, %v935
        %v1023 = vsel %vm425, %v817, %v937
        %v1024 = vsel %vm425, %v819, %v939
        %v1025 = vsel %vm425, %v821, %v941
        %v1026 = vsel %vm425, %v823, %v943
        %v1027 = vsel %vm425, %v825, %v945
        %v1028 = vsel %vm425, %v827, %v947
        %v1029 = vsel %vm425, %v829, %v949
        %v1030 = vsel %vm425, %v839, %v951
        %v1031 = vsel %vm425, %v841, %v953
        %v1032 = vsel %vm425, %v843, %v955
        %v1033 = vsel %vm425, %v845, %v957
        %v1034 = vsel %vm425, %v847, %v959
        %v1035 = vsel %vm425, %v849, %v961
        %v1036 = vsel %vm425, %v851, %v963
        %v1037 = vsel %vm425, %v853, %v965
        %v1038 = vsel %vm425, %v863, %v967
        %v1039 = vsel %vm425, %v865, %v969
        %v1040 = vsel %vm425, %v867, %v971
        %v1041 = vsel %vm425, %v869, %v973
        %v1042 = vsel %vm425, %v871, %v975
        %v1043 = vsel %vm425, %v873, %v977
        %v1044 = vsel %vm425, %v875, %v979
        %v1045 = vsel %vm425, %v877, %v981
        %v1046 = vld [vmem:[%s4] sm:$0xf]
        %v1047 = vpack.c.bf16 %v1015, %v1014
        %v1048 = vpack.c.bf16 %v1017, %v1016
        %v1049 = vpack.c.bf16 %v1019, %v1018
        %v1050 = vpack.c.bf16 %v1021, %v1020
        %v1051 = vpack.c.bf16 %v1023, %v1022
        %v1052 = vpack.c.bf16 %v1025, %v1024
        %v1053 = vpack.c.bf16 %v1027, %v1026
        %v1054 = vpack.c.bf16 %v1029, %v1028
        %v1055 = vpack.c.bf16 %v1031, %v1030
        %v1056 = vpack.c.bf16 %v1033, %v1032
        %v1057 = vpack.c.bf16 %v1035, %v1034
        %v1058 = vpack.c.bf16 %v1037, %v1036
        %v1059 = vpack.c.bf16 %v1039, %v1038
        %v1060 = vpack.c.bf16 %v1041, %v1040
        %v1061 = vpack.c.bf16 %v1043, %v1042
        %v1062 = vpack.c.bf16 %v1045, %v1044
        %v1063 = vld [vmem:[%s5] sm:$0x1]
        %v1065 = vperm.slane %v1063, 0
        %vm1067 = vcmask 64512
        %v1069 = vsel %vm1067, %v1047, 0
        %v1072 = vsel %vm1067, %v1048, 0
        %v1075 = vsel %vm1067, %v1049, 0
        %v1078 = vsel %vm1067, %v1050, 0
        %v1081 = vsel %vm1067, %v1051, 0
        %v1084 = vsel %vm1067, %v1052, 0
        %v1087 = vsel %vm1067, %v1053, 0
        %v1090 = vsel %vm1067, %v1054, 0
        %v1093 = vsel %vm1067, %v1055, 0
        %v1096 = vsel %vm1067, %v1056, 0
        %v1099 = vsel %vm1067, %v1057, 0
        %v1102 = vsel %vm1067, %v1058, 0
        %v1105 = vsel %vm1067, %v1059, 0
        %v1108 = vsel %vm1067, %v1060, 0
        %v1111 = vsel %vm1067, %v1061, 0
        %v1114 = vsel %vm1067, %v1062, 0
        %vm1116 = vcmask 1043456
        %v1118 = vsel %vm1116, %v1046, 0
        %1120 = vmatpush.bf16.msra.mxu0 0
        %1121 = vmatpush.bf16.msra.mxu0 0
        %1122 = vmatpush.bf16.msra.mxu0 0
        %1123 = vmatpush.bf16.msra.mxu0 0
        %1124 = vmatpush.bf16.msra.mxu0 0
        %1125 = vmatpush.bf16.msra.mxu0 0
        %1126 = vmatpush.bf16.msra.mxu0 0
        %1127 = vmatpush.bf16.msra.mxu0 %v1118
        %1128 = vmatmul.bf16.gmra.mxu0 %v1069
        %v1129 = vpop.f32.mrf.mxu0
        %v1130 = vadd.f32 %v1065, %v1129
        %v1131 = vpop.f32.mrf.mxu0
        %v1132 = vadd.f32 %v1065, %v1131
        %1133 = vmatmul.bf16.gmra.mxu0 %v1072
        %v1134 = vpop.f32.mrf.mxu0
        %v1135 = vadd.f32 %v1065, %v1134
        %v1136 = vpop.f32.mrf.mxu0
        %v1137 = vadd.f32 %v1065, %v1136
        %1138 = vmatmul.bf16.gmra.mxu0 %v1075
        %v1139 = vpop.f32.mrf.mxu0
        %v1140 = vadd.f32 %v1065, %v1139
        %v1141 = vpop.f32.mrf.mxu0
        %v1142 = vadd.f32 %v1065, %v1141
        %1143 = vmatmul.bf16.gmra.mxu0 %v1078
        %v1144 = vpop.f32.mrf.mxu0
        %v1145 = vadd.f32 %v1065, %v1144
        %v1146 = vpop.f32.mrf.mxu0
        %v1147 = vadd.f32 %v1065, %v1146
        %1148 = vmatmul.bf16.gmra.mxu0 %v1081
        %v1149 = vpop.f32.mrf.mxu0
        %v1150 = vadd.f32 %v1065, %v1149
        %v1151 = vpop.f32.mrf.mxu0
        %v1152 = vadd.f32 %v1065, %v1151
        %1153 = vmatmul.bf16.gmra.mxu0 %v1084
        %v1154 = vpop.f32.mrf.mxu0
        %v1155 = vadd.f32 %v1065, %v1154
        %v1156 = vpop.f32.mrf.mxu0
        %v1157 = vadd.f32 %v1065, %v1156
        %1158 = vmatmul.bf16.gmra.mxu0 %v1087
        %v1159 = vpop.f32.mrf.mxu0
        %v1160 = vadd.f32 %v1065, %v1159
        %v1161 = vpop.f32.mrf.mxu0
        %v1162 = vadd.f32 %v1065, %v1161
        %1163 = vmatmul.bf16.gmra.mxu0 %v1090
        %v1164 = vpop.f32.mrf.mxu0
        %v1165 = vadd.f32 %v1065, %v1164
        %v1166 = vpop.f32.mrf.mxu0
        %v1167 = vadd.f32 %v1065, %v1166
        %1168 = vmatmul.bf16.gmra.mxu0 %v1093
        %v1169 = vpop.f32.mrf.mxu0
        %v1170 = vadd.f32 %v1065, %v1169
        %v1171 = vpop.f32.mrf.mxu0
        %v1172 = vadd.f32 %v1065, %v1171
        %1173 = vmatmul.bf16.gmra.mxu0 %v1096
        %v1174 = vpop.f32.mrf.mxu0
        %v1175 = vadd.f32 %v1065, %v1174
        %v1176 = vpop.f32.mrf.mxu0
        %v1177 = vadd.f32 %v1065, %v1176
        %1178 = vmatmul.bf16.gmra.mxu0 %v1099
        %v1179 = vpop.f32.mrf.mxu0
        %v1180 = vadd.f32 %v1065, %v1179
        %v1181 = vpop.f32.mrf.mxu0
        %v1182 = vadd.f32 %v1065, %v1181
        %1183 = vmatmul.bf16.gmra.mxu0 %v1102
        %v1184 = vpop.f32.mrf.mxu0
        %v1185 = vadd.f32 %v1065, %v1184
        %v1186 = vpop.f32.mrf.mxu0
        %v1187 = vadd.f32 %v1065, %v1186
        %1188 = vmatmul.bf16.gmra.mxu0 %v1105
        %v1189 = vpop.f32.mrf.mxu0
        %v1190 = vadd.f32 %v1065, %v1189
        %v1191 = vpop.f32.mrf.mxu0
        %v1192 = vadd.f32 %v1065, %v1191
        %1193 = vmatmul.bf16.gmra.mxu0 %v1108
        %v1194 = vpop.f32.mrf.mxu0
        %v1195 = vadd.f32 %v1065, %v1194
        %v1196 = vpop.f32.mrf.mxu0
        %v1197 = vadd.f32 %v1065, %v1196
        %1198 = vmatmul.bf16.gmra.mxu0 %v1111
        %v1199 = vpop.f32.mrf.mxu0
        %v1200 = vadd.f32 %v1065, %v1199
        %v1201 = vpop.f32.mrf.mxu0
        %v1202 = vadd.f32 %v1065, %v1201
        %1203 = vmatmul.bf16.gmra.mxu0 %v1114
        %v1204 = vpop.f32.mrf.mxu0
        %v1205 = vadd.f32 %v1065, %v1204
        %v1206 = vpop.f32.mrf.mxu0
        %v1207 = vadd.f32 %v1065, %v1206
        %1208 = vdwg.mxu0
        %vm1209 = vcmp.ge.f32.partialorder %v1130, 0.0
        %vm1210 = vcmp.ge.f32.partialorder %v1132, 0.0
        %vm1211 = vcmp.ge.f32.partialorder %v1135, 0.0
        %vm1212 = vcmp.ge.f32.partialorder %v1137, 0.0
        %vm1213 = vcmp.ge.f32.partialorder %v1140, 0.0
        %vm1214 = vcmp.ge.f32.partialorder %v1142, 0.0
        %vm1215 = vcmp.ge.f32.partialorder %v1145, 0.0
        %vm1216 = vcmp.ge.f32.partialorder %v1147, 0.0
        %vm1217 = vcmp.ge.f32.partialorder %v1150, 0.0
        %vm1218 = vcmp.ge.f32.partialorder %v1152, 0.0
        %vm1219 = vcmp.ge.f32.partialorder %v1155, 0.0
        %vm1220 = vcmp.ge.f32.partialorder %v1157, 0.0
        %vm1221 = vcmp.ge.f32.partialorder %v1160, 0.0
        %vm1222 = vcmp.ge.f32.partialorder %v1162, 0.0
        %vm1223 = vcmp.ge.f32.partialorder %v1165, 0.0
        %vm1224 = vcmp.ge.f32.partialorder %v1167, 0.0
        %vm1225 = vcmp.ge.f32.partialorder %v1170, 0.0
        %vm1226 = vcmp.ge.f32.partialorder %v1172, 0.0
        %vm1227 = vcmp.ge.f32.partialorder %v1175, 0.0
        %vm1228 = vcmp.ge.f32.partialorder %v1177, 0.0
        %vm1229 = vcmp.ge.f32.partialorder %v1180, 0.0
        %vm1230 = vcmp.ge.f32.partialorder %v1182, 0.0
        %vm1231 = vcmp.ge.f32.partialorder %v1185, 0.0
        %vm1232 = vcmp.ge.f32.partialorder %v1187, 0.0
        %vm1233 = vcmp.ge.f32.partialorder %v1190, 0.0
        %vm1234 = vcmp.ge.f32.partialorder %v1192, 0.0
        %vm1235 = vcmp.ge.f32.partialorder %v1195, 0.0
        %vm1236 = vcmp.ge.f32.partialorder %v1197, 0.0
        %vm1237 = vcmp.ge.f32.partialorder %v1200, 0.0
        %vm1238 = vcmp.ge.f32.partialorder %v1202, 0.0
        %vm1239 = vcmp.ge.f32.partialorder %v1205, 0.0
        %vm1240 = vcmp.ge.f32.partialorder %v1207, 0.0
        %v1241 = vstv %s423
        %v1242 = vmul.f32 %v1241, %v1130
        %v1243 = vmul.f32 %v1241, %v1132
        %v1244 = vmul.f32 %v1241, %v1135
        %v1245 = vmul.f32 %v1241, %v1137
        %v1246 = vmul.f32 %v1241, %v1140
        %v1247 = vmul.f32 %v1241, %v1142
        %v1248 = vmul.f32 %v1241, %v1145
        %v1249 = vmul.f32 %v1241, %v1147
        %v1250 = vmul.f32 %v1241, %v1150
        %v1251 = vmul.f32 %v1241, %v1152
        %v1252 = vmul.f32 %v1241, %v1155
        %v1253 = vmul.f32 %v1241, %v1157
        %v1254 = vmul.f32 %v1241, %v1160
        %v1255 = vmul.f32 %v1241, %v1162
        %v1256 = vmul.f32 %v1241, %v1165
        %v1257 = vmul.f32 %v1241, %v1167
        %v1258 = vmul.f32 %v1241, %v1170
        %v1259 = vmul.f32 %v1241, %v1172
        %v1260 = vmul.f32 %v1241, %v1175
        %v1261 = vmul.f32 %v1241, %v1177
        %v1262 = vmul.f32 %v1241, %v1180
        %v1263 = vmul.f32 %v1241, %v1182
        %v1264 = vmul.f32 %v1241, %v1185
        %v1265 = vmul.f32 %v1241, %v1187
        %v1266 = vmul.f32 %v1241, %v1190
        %v1267 = vmul.f32 %v1241, %v1192
        %v1268 = vmul.f32 %v1241, %v1195
        %v1269 = vmul.f32 %v1241, %v1197
        %v1270 = vmul.f32 %v1241, %v1200
        %v1271 = vmul.f32 %v1241, %v1202
        %v1272 = vmul.f32 %v1241, %v1205
        %v1273 = vmul.f32 %v1241, %v1207
        %v1274 = vsel %vm1209, %v1130, %v1242
        %v1275 = vsel %vm1210, %v1132, %v1243
        %v1276 = vsel %vm1211, %v1135, %v1244
        %v1277 = vsel %vm1212, %v1137, %v1245
        %v1278 = vsel %vm1213, %v1140, %v1246
        %v1279 = vsel %vm1214, %v1142, %v1247
        %v1280 = vsel %vm1215, %v1145, %v1248
        %v1281 = vsel %vm1216, %v1147, %v1249
        %v1282 = vsel %vm1217, %v1150, %v1250
        %v1283 = vsel %vm1218, %v1152, %v1251
        %v1284 = vsel %vm1219, %v1155, %v1252
        %v1285 = vsel %vm1220, %v1157, %v1253
        %v1286 = vsel %vm1221, %v1160, %v1254
        %v1287 = vsel %vm1222, %v1162, %v1255
        %v1288 = vsel %vm1223, %v1165, %v1256
        %v1289 = vsel %vm1224, %v1167, %v1257
        %v1290 = vsel %vm1225, %v1170, %v1258
        %v1291 = vsel %vm1226, %v1172, %v1259
        %v1292 = vsel %vm1227, %v1175, %v1260
        %v1293 = vsel %vm1228, %v1177, %v1261
        %v1294 = vsel %vm1229, %v1180, %v1262
        %v1295 = vsel %vm1230, %v1182, %v1263
        %v1296 = vsel %vm1231, %v1185, %v1264
        %v1297 = vsel %vm1232, %v1187, %v1265
        %v1298 = vsel %vm1233, %v1190, %v1266
        %v1299 = vsel %vm1234, %v1192, %v1267
        %v1300 = vsel %vm1235, %v1195, %v1268
        %v1301 = vsel %vm1236, %v1197, %v1269
        %v1302 = vsel %vm1237, %v1200, %v1270
        %v1303 = vsel %vm1238, %v1202, %v1271
        %v1304 = vsel %vm1239, %v1205, %v1272
        %v1305 = vsel %vm1240, %v1207, %v1273
        %s1306 = scalar_lea.vmem [#allocation2], 16
        %1307 = vst.msk [vmem:[%s1306 + $0x1] sm:$0xff] %vm425, %v1274
        %1308 = vst.msk [vmem:[%s1306 + $0x11] sm:$0xff] %vm425, %v1275
        %1309 = vst.msk [vmem:[%s1306 + $0x21] sm:$0xff] %vm425, %v1276
        %1310 = vst.msk [vmem:[%s1306 + $0x31] sm:$0xff] %vm425, %v1277
        %1311 = vst.msk [vmem:[%s1306 + $0x41] sm:$0xff] %vm425, %v1278
        %1312 = vst.msk [vmem:[%s1306 + $0x51] sm:$0xff] %vm425, %v1279
        %1313 = vst.msk [vmem:[%s1306 + $0x61] sm:$0xff] %vm425, %v1280
        %1314 = vst.msk [vmem:[%s1306 + $0x71] sm:$0xff] %vm425, %v1281
        %1315 = vst.msk [vmem:[%s1306 + $0x91] sm:$0xff] %vm425, %v1282
        %1316 = vst.msk [vmem:[%s1306 + $0xa1] sm:$0xff] %vm425, %v1283
        %1317 = vst.msk [vmem:[%s1306 + $0xb1] sm:$0xff] %vm425, %v1284
        %1318 = vst.msk [vmem:[%s1306 + $0xc1] sm:$0xff] %vm425, %v1285
        %1319 = vst.msk [vmem:[%s1306 + $0xd1] sm:$0xff] %vm425, %v1286
        %1320 = vst.msk [vmem:[%s1306 + $0xe1] sm:$0xff] %vm425, %v1287
        %1321 = vst.msk [vmem:[%s1306 + $0xf1] sm:$0xff] %vm425, %v1288
        %1322 = vst.msk [vmem:[%s1306 + $0x101] sm:$0xff] %vm425, %v1289
        %1323 = vst.msk [vmem:[%s1306 + $0x121] sm:$0xff] %vm425, %v1290
        %1324 = vst.msk [vmem:[%s1306 + $0x131] sm:$0xff] %vm425, %v1291
        %1325 = vst.msk [vmem:[%s1306 + $0x141] sm:$0xff] %vm425, %v1292
        %1326 = vst.msk [vmem:[%s1306 + $0x151] sm:$0xff] %vm425, %v1293
        %1327 = vst.msk [vmem:[%s1306 + $0x161] sm:$0xff] %vm425, %v1294
        %1328 = vst.msk [vmem:[%s1306 + $0x171] sm:$0xff] %vm425, %v1295
        %1329 = vst.msk [vmem:[%s1306 + $0x181] sm:$0xff] %vm425, %v1296
        %1330 = vst.msk [vmem:[%s1306 + $0x191] sm:$0xff] %vm425, %v1297
        %1331 = vst.msk [vmem:[%s1306 + $0x1b1] sm:$0xff] %vm425, %v1298
        %1332 = vst.msk [vmem:[%s1306 + $0x1c1] sm:$0xff] %vm425, %v1299
        %1333 = vst.msk [vmem:[%s1306 + $0x1d1] sm:$0xff] %vm425, %v1300
        %1334 = vst.msk [vmem:[%s1306 + $0x1e1] sm:$0xff] %vm425, %v1301
        %1335 = vst.msk [vmem:[%s1306 + $0x1f1] sm:$0xff] %vm425, %v1302
        %1336 = vst.msk [vmem:[%s1306 + $0x201] sm:$0xff] %vm425, %v1303
        %1337 = vst.msk [vmem:[%s1306 + $0x211] sm:$0xff] %vm425, %v1304
        %1338 = vst.msk [vmem:[%s1306 + $0x221] sm:$0xff] %vm425, %v1305
        %s1339 = scalar_lea.vmem [#allocation2], 432
        %v1340 = vld [vmem:[%s1339] sm:$0xff]
        %v1341 = vld [vmem:[%s1339 + $0x10] sm:$0xff]
        %v1342 = vld [vmem:[%s1339 + $0x20] sm:$0xff]
        %v1343 = vld [vmem:[%s1339 + $0x30] sm:$0xff]
        %v1344 = vld [vmem:[%s1339 + $0x40] sm:$0xff]
        %v1345 = vld [vmem:[%s1339 + $0x50] sm:$0xff]
        %v1346 = vld [vmem:[%s1339 + $0x60] sm:$0xff]
        %v1347 = vld [vmem:[%s1339 + $0x70] sm:$0xff]
        %v1348 = vld [vmem:[%s6] sm:$0x3]
        %v1349 = vpack.c.bf16 %v1341, %v1340
        %v1350 = vpack.c.bf16 %v1343, %v1342
        %v1351 = vpack.c.bf16 %v1345, %v1344
        %v1352 = vpack.c.bf16 %v1347, %v1346
        %s1353 = scalar_lea.vmem [#allocation2], 288
        %v1354 = vld [vmem:[%s1353 + $0x1] sm:$0xff]
        %v1355 = vld [vmem:[%s1353 + $0x11] sm:$0xff]
        %v1356 = vld [vmem:[%s1353 + $0x21] sm:$0xff]
        %v1357 = vld [vmem:[%s1353 + $0x31] sm:$0xff]
        %v1358 = vld [vmem:[%s1353 + $0x41] sm:$0xff]
        %v1359 = vld [vmem:[%s1353 + $0x51] sm:$0xff]
        %v1360 = vld [vmem:[%s1353 + $0x61] sm:$0xff]
        %v1361 = vld [vmem:[%s1353 + $0x71] sm:$0xff]
        %v1362 = vld [vmem:[%s6] sm:$0xc]
        %v1363 = vpack.c.bf16 %v1355, %v1354
        %v1364 = vpack.c.bf16 %v1357, %v1356
        %v1365 = vpack.c.bf16 %v1359, %v1358
        %v1366 = vpack.c.bf16 %v1361, %v1360
        %v1368 = vunpack.c.l.b16 %v1362
        %v1369 = vpack.c.b16 %v1368, %v1368
        %v1370 = vrot.slane %v1369, 2
        %v1372 = vsel %vm425, %v1363, 0
        %v1375 = vsel %vm425, %v1364, 0
        %v1378 = vsel %vm425, %v1365, 0
        %v1381 = vsel %vm425, %v1366, 0
        %v1384 = vsel %vm557, %v1370, 0
        %1386 = vmatpush.bf16.msra.mxu0 0
        %1387 = vmatpush.bf16.msra.mxu0 0
        %1388 = vmatpush.bf16.msra.mxu0 0
        %1389 = vmatpush.bf16.msra.mxu0 0
        %1390 = vmatpush.bf16.msra.mxu0 0
        %1391 = vmatpush.bf16.msra.mxu0 0
        %1392 = vmatpush.bf16.msra.mxu0 0
        %1393 = vmatpush.bf16.msra.mxu0 %v1384
        %1394 = vmatmul.bf16.gmra.mxu0 %v1372
        %v1395 = vpop.f32.mrf.mxu0
        %v1396 = vadd.f32 0.0, %v1395
        %v1397 = vpop.f32.mrf.mxu0
        %v1398 = vadd.f32 0.0, %v1397
        %1399 = vmatmul.bf16.gmra.mxu0 %v1375
        %v1400 = vpop.f32.mrf.mxu0
        %v1401 = vadd.f32 0.0, %v1400
        %v1402 = vpop.f32.mrf.mxu0
        %v1403 = vadd.f32 0.0, %v1402
        %1404 = vmatmul.bf16.gmra.mxu0 %v1378
        %v1405 = vpop.f32.mrf.mxu0
        %v1406 = vadd.f32 0.0, %v1405
        %v1407 = vpop.f32.mrf.mxu0
        %v1408 = vadd.f32 0.0, %v1407
        %1409 = vmatmul.bf16.gmra.mxu0 %v1381
        %v1410 = vpop.f32.mrf.mxu0
        %v1411 = vadd.f32 0.0, %v1410
        %v1412 = vpop.f32.mrf.mxu0
        %v1413 = vadd.f32 0.0, %v1412
        %1414 = vdwg.mxu0
        %v1416 = vsel %vm425, %v1349, 0
        %v1419 = vsel %vm425, %v1350, 0
        %v1422 = vsel %vm425, %v1351, 0
        %v1425 = vsel %vm425, %v1352, 0
        %v1428 = vsel %vm557, %v1348, 0
        %1430 = vmatpush.bf16.msra.mxu0 0
        %1431 = vmatpush.bf16.msra.mxu0 0
        %1432 = vmatpush.bf16.msra.mxu0 0
        %1433 = vmatpush.bf16.msra.mxu0 0
        %1434 = vmatpush.bf16.msra.mxu0 0
        %1435 = vmatpush.bf16.msra.mxu0 0
        %1436 = vmatpush.bf16.msra.mxu0 0
        %1437 = vmatpush.bf16.msra.mxu0 %v1428
        %1438 = vmatmul.bf16.gmra.mxu0 %v1416
        %v1439 = vpop.f32.mrf.mxu0
        %v1440 = vadd.f32 %v1396, %v1439
        %v1441 = vpop.f32.mrf.mxu0
        %v1442 = vadd.f32 %v1398, %v1441
        %1443 = vmatmul.bf16.gmra.mxu0 %v1419
        %v1444 = vpop.f32.mrf.mxu0
        %v1445 = vadd.f32 %v1401, %v1444
        %v1446 = vpop.f32.mrf.mxu0
        %v1447 = vadd.f32 %v1403, %v1446
        %1448 = vmatmul.bf16.gmra.mxu0 %v1422
        %v1449 = vpop.f32.mrf.mxu0
        %v1450 = vadd.f32 %v1406, %v1449
        %v1451 = vpop.f32.mrf.mxu0
        %v1452 = vadd.f32 %v1408, %v1451
        %1453 = vmatmul.bf16.gmra.mxu0 %v1425
        %v1454 = vpop.f32.mrf.mxu0
        %v1455 = vadd.f32 %v1411, %v1454
        %v1456 = vpop.f32.mrf.mxu0
        %v1457 = vadd.f32 %v1413, %v1456
        %1458 = vdwg.mxu0
        %v1459 = vld [vmem:[%s1339 + $0x1] sm:$0xff]
        %v1460 = vld [vmem:[%s1339 + $0x11] sm:$0xff]
        %v1461 = vld [vmem:[%s1339 + $0x21] sm:$0xff]
        %v1462 = vld [vmem:[%s1339 + $0x31] sm:$0xff]
        %v1463 = vld [vmem:[%s1339 + $0x41] sm:$0xff]
        %v1464 = vld [vmem:[%s1339 + $0x51] sm:$0xff]
        %v1465 = vld [vmem:[%s1339 + $0x61] sm:$0xff]
        %v1466 = vld [vmem:[%s1339 + $0x71] sm:$0xff]
        %v1467 = vld [vmem:[%s6 + $0x4] sm:$0x3]
        %v1468 = vpack.c.bf16 %v1460, %v1459
        %v1469 = vpack.c.bf16 %v1462, %v1461
        %v1470 = vpack.c.bf16 %v1464, %v1463
        %v1471 = vpack.c.bf16 %v1466, %v1465
        %v1473 = vsel %vm425, %v1468, 0
        %v1476 = vsel %vm425, %v1469, 0
        %v1479 = vsel %vm425, %v1470, 0
        %v1482 = vsel %vm425, %v1471, 0
        %v1485 = vsel %vm557, %v1467, 0
        %1487 = vmatpush.bf16.msra.mxu0 0
        %1488 = vmatpush.bf16.msra.mxu0 0
        %1489 = vmatpush.bf16.msra.mxu0 0
        %1490 = vmatpush.bf16.msra.mxu0 0
        %1491 = vmatpush.bf16.msra.mxu0 0
        %1492 = vmatpush.bf16.msra.mxu0 0
        %1493 = vmatpush.bf16.msra.mxu0 0
        %1494 = vmatpush.bf16.msra.mxu0 %v1485
        %1495 = vmatmul.bf16.gmra.mxu0 %v1473
        %v1496 = vpop.f32.mrf.mxu0
        %v1497 = vadd.f32 0.0, %v1496
        %v1498 = vpop.f32.mrf.mxu0
        %v1499 = vadd.f32 0.0, %v1498
        %1500 = vmatmul.bf16.gmra.mxu0 %v1476
        %v1501 = vpop.f32.mrf.mxu0
        %v1502 = vadd.f32 0.0, %v1501
        %v1503 = vpop.f32.mrf.mxu0
        %v1504 = vadd.f32 0.0, %v1503
        %1505 = vmatmul.bf16.gmra.mxu0 %v1479
        %v1506 = vpop.f32.mrf.mxu0
        %v1507 = vadd.f32 0.0, %v1506
        %v1508 = vpop.f32.mrf.mxu0
        %v1509 = vadd.f32 0.0, %v1508
        %1510 = vmatmul.bf16.gmra.mxu0 %v1482
        %v1511 = vpop.f32.mrf.mxu0
        %v1512 = vadd.f32 0.0, %v1511
        %v1513 = vpop.f32.mrf.mxu0
        %v1514 = vadd.f32 0.0, %v1513
        %1515 = vdwg.mxu0
        %v1516 = vadd.f32 %v1440, %v1497
        %v1517 = vadd.f32 %v1442, %v1499
        %v1518 = vadd.f32 %v1445, %v1502
        %v1519 = vadd.f32 %v1447, %v1504
        %v1520 = vadd.f32 %v1450, %v1507
        %v1521 = vadd.f32 %v1452, %v1509
        %v1522 = vadd.f32 %v1455, %v1512
        %v1523 = vadd.f32 %v1457, %v1514
        %s1524 = scalar_lea.vmem [#allocation2], 160
        %v1525 = vld [vmem:[%s1524] sm:$0xff]
        %v1526 = vld [vmem:[%s1524 + $0x10] sm:$0xff]
        %v1527 = vld [vmem:[%s1524 + $0x20] sm:$0xff]
        %v1528 = vld [vmem:[%s1524 + $0x30] sm:$0xff]
        %v1529 = vld [vmem:[%s1524 + $0x40] sm:$0xff]
        %v1530 = vld [vmem:[%s1524 + $0x50] sm:$0xff]
        %v1531 = vld [vmem:[%s1524 + $0x60] sm:$0xff]
        %v1532 = vld [vmem:[%s1524 + $0x70] sm:$0xff]
        %v1533 = vld [vmem:[%s6 + $0x4] sm:$0xc]
        %v1534 = vpack.c.bf16 %v1526, %v1525
        %v1535 = vpack.c.bf16 %v1528, %v1527
        %v1536 = vpack.c.bf16 %v1530, %v1529
        %v1537 = vpack.c.bf16 %v1532, %v1531
        %v1539 = vunpack.c.l.b16 %v1533
        %v1540 = vpack.c.b16 %v1539, %v1539
        %v1541 = vrot.slane %v1540, 2
        %v1543 = vsel %vm425, %v1534, 0
        %v1546 = vsel %vm425, %v1535, 0
        %v1549 = vsel %vm425, %v1536, 0
        %v1552 = vsel %vm425, %v1537, 0
        %v1555 = vsel %vm557, %v1541, 0
        %1557 = vmatpush.bf16.msra.mxu0 0
        %1558 = vmatpush.bf16.msra.mxu0 0
        %1559 = vmatpush.bf16.msra.mxu0 0
        %1560 = vmatpush.bf16.msra.mxu0 0
        %1561 = vmatpush.bf16.msra.mxu0 0
        %1562 = vmatpush.bf16.msra.mxu0 0
        %1563 = vmatpush.bf16.msra.mxu0 0
        %1564 = vmatpush.bf16.msra.mxu0 %v1555
        %1565 = vmatmul.bf16.gmra.mxu0 %v1543
        %v1566 = vpop.f32.mrf.mxu0
        %v1567 = vadd.f32 0.0, %v1566
        %v1568 = vpop.f32.mrf.mxu0
        %v1569 = vadd.f32 0.0, %v1568
        %1570 = vmatmul.bf16.gmra.mxu0 %v1546
        %v1571 = vpop.f32.mrf.mxu0
        %v1572 = vadd.f32 0.0, %v1571
        %v1573 = vpop.f32.mrf.mxu0
        %v1574 = vadd.f32 0.0, %v1573
        %1575 = vmatmul.bf16.gmra.mxu0 %v1549
        %v1576 = vpop.f32.mrf.mxu0
        %v1577 = vadd.f32 0.0, %v1576
        %v1578 = vpop.f32.mrf.mxu0
        %v1579 = vadd.f32 0.0, %v1578
        %1580 = vmatmul.bf16.gmra.mxu0 %v1552
        %v1581 = vpop.f32.mrf.mxu0
        %v1582 = vadd.f32 0.0, %v1581
        %v1583 = vpop.f32.mrf.mxu0
        %v1584 = vadd.f32 0.0, %v1583
        %1585 = vdwg.mxu0
        %v1586 = vadd.f32 %v1516, %v1567
        %v1587 = vadd.f32 %v1517, %v1569
        %v1588 = vadd.f32 %v1518, %v1572
        %v1589 = vadd.f32 %v1519, %v1574
        %v1590 = vadd.f32 %v1520, %v1577
        %v1591 = vadd.f32 %v1521, %v1579
        %v1592 = vadd.f32 %v1522, %v1582
        %v1593 = vadd.f32 %v1523, %v1584
        %v1594 = vld [vmem:[%s1306 + $0x1] sm:$0xff]
        %v1595 = vld [vmem:[%s1306 + $0x11] sm:$0xff]
        %v1596 = vld [vmem:[%s1306 + $0x21] sm:$0xff]
        %v1597 = vld [vmem:[%s1306 + $0x31] sm:$0xff]
        %v1598 = vld [vmem:[%s1306 + $0x41] sm:$0xff]
        %v1599 = vld [vmem:[%s1306 + $0x51] sm:$0xff]
        %v1600 = vld [vmem:[%s1306 + $0x61] sm:$0xff]
        %v1601 = vld [vmem:[%s1306 + $0x71] sm:$0xff]
        %v1602 = vld [vmem:[%s6 + $0x8] sm:$0x3]
        %v1603 = vpack.c.bf16 %v1595, %v1594
        %v1604 = vpack.c.bf16 %v1597, %v1596
        %v1605 = vpack.c.bf16 %v1599, %v1598
        %v1606 = vpack.c.bf16 %v1601, %v1600
        %v1608 = vsel %vm425, %v1603, 0
        %v1611 = vsel %vm425, %v1604, 0
        %v1614 = vsel %vm425, %v1605, 0
        %v1617 = vsel %vm425, %v1606, 0
        %v1620 = vsel %vm557, %v1602, 0
        %1622 = vmatpush.bf16.msra.mxu0 0
        %1623 = vmatpush.bf16.msra.mxu0 0
        %1624 = vmatpush.bf16.msra.mxu0 0
        %1625 = vmatpush.bf16.msra.mxu0 0
        %1626 = vmatpush.bf16.msra.mxu0 0
        %1627 = vmatpush.bf16.msra.mxu0 0
        %1628 = vmatpush.bf16.msra.mxu0 0
        %1629 = vmatpush.bf16.msra.mxu0 %v1620
        %1630 = vmatmul.bf16.gmra.mxu0 %v1608
        %v1631 = vpop.f32.mrf.mxu0
        %v1632 = vadd.f32 0.0, %v1631
        %v1633 = vpop.f32.mrf.mxu0
        %v1634 = vadd.f32 0.0, %v1633
        %1635 = vmatmul.bf16.gmra.mxu0 %v1611
        %v1636 = vpop.f32.mrf.mxu0
        %v1637 = vadd.f32 0.0, %v1636
        %v1638 = vpop.f32.mrf.mxu0
        %v1639 = vadd.f32 0.0, %v1638
        %1640 = vmatmul.bf16.gmra.mxu0 %v1614
        %v1641 = vpop.f32.mrf.mxu0
        %v1642 = vadd.f32 0.0, %v1641
        %v1643 = vpop.f32.mrf.mxu0
        %v1644 = vadd.f32 0.0, %v1643
        %1645 = vmatmul.bf16.gmra.mxu0 %v1617
        %v1646 = vpop.f32.mrf.mxu0
        %v1647 = vadd.f32 0.0, %v1646
        %v1648 = vpop.f32.mrf.mxu0
        %v1649 = vadd.f32 0.0, %v1648
        %1650 = vdwg.mxu0
        %v1651 = vadd.f32 %v1586, %v1632
        %v1652 = vadd.f32 %v1587, %v1634
        %v1653 = vadd.f32 %v1588, %v1637
        %v1654 = vadd.f32 %v1589, %v1639
        %v1655 = vadd.f32 %v1590, %v1642
        %v1656 = vadd.f32 %v1591, %v1644
        %v1657 = vadd.f32 %v1592, %v1647
        %v1658 = vadd.f32 %v1593, %v1649
        %v1659 = vld [vmem:[%s1524 + $0x1] sm:$0xff]
        %v1660 = vld [vmem:[%s1524 + $0x11] sm:$0xff]
        %v1661 = vld [vmem:[%s1524 + $0x21] sm:$0xff]
        %v1662 = vld [vmem:[%s1524 + $0x31] sm:$0xff]
        %v1663 = vld [vmem:[%s1524 + $0x41] sm:$0xff]
        %v1664 = vld [vmem:[%s1524 + $0x51] sm:$0xff]
        %v1665 = vld [vmem:[%s1524 + $0x61] sm:$0xff]
        %v1666 = vld [vmem:[%s1524 + $0x71] sm:$0xff]
        %v1667 = vld [vmem:[%s6 + $0x8] sm:$0xc]
        %v1668 = vpack.c.bf16 %v1660, %v1659
        %v1669 = vpack.c.bf16 %v1662, %v1661
        %v1670 = vpack.c.bf16 %v1664, %v1663
        %v1671 = vpack.c.bf16 %v1666, %v1665
        %v1673 = vunpack.c.l.b16 %v1667
        %v1674 = vpack.c.b16 %v1673, %v1673
        %v1675 = vrot.slane %v1674, 2
        %v1677 = vsel %vm425, %v1668, 0
        %v1680 = vsel %vm425, %v1669, 0
        %v1683 = vsel %vm425, %v1670, 0
        %v1686 = vsel %vm425, %v1671, 0
        %v1689 = vsel %vm557, %v1675, 0
        %1691 = vmatpush.bf16.msra.mxu0 0
        %1692 = vmatpush.bf16.msra.mxu0 0
        %1693 = vmatpush.bf16.msra.mxu0 0
        %1694 = vmatpush.bf16.msra.mxu0 0
        %1695 = vmatpush.bf16.msra.mxu0 0
        %1696 = vmatpush.bf16.msra.mxu0 0
        %1697 = vmatpush.bf16.msra.mxu0 0
        %1698 = vmatpush.bf16.msra.mxu0 %v1689
        %1699 = vmatmul.bf16.gmra.mxu0 %v1677
        %v1700 = vpop.f32.mrf.mxu0
        %v1701 = vadd.f32 0.0, %v1700
        %v1702 = vpop.f32.mrf.mxu0
        %v1703 = vadd.f32 0.0, %v1702
        %1704 = vmatmul.bf16.gmra.mxu0 %v1680
        %v1705 = vpop.f32.mrf.mxu0
        %v1706 = vadd.f32 0.0, %v1705
        %v1707 = vpop.f32.mrf.mxu0
        %v1708 = vadd.f32 0.0, %v1707
        %1709 = vmatmul.bf16.gmra.mxu0 %v1683
        %v1710 = vpop.f32.mrf.mxu0
        %v1711 = vadd.f32 0.0, %v1710
        %v1712 = vpop.f32.mrf.mxu0
        %v1713 = vadd.f32 0.0, %v1712
        %1714 = vmatmul.bf16.gmra.mxu0 %v1686
        %v1715 = vpop.f32.mrf.mxu0
        %v1716 = vadd.f32 0.0, %v1715
        %v1717 = vpop.f32.mrf.mxu0
        %v1718 = vadd.f32 0.0, %v1717
        %1719 = vdwg.mxu0
        %v1720 = vadd.f32 %v1651, %v1701
        %v1721 = vadd.f32 %v1652, %v1703
        %v1722 = vadd.f32 %v1653, %v1706
        %v1723 = vadd.f32 %v1654, %v1708
        %v1724 = vadd.f32 %v1655, %v1711
        %v1725 = vadd.f32 %v1656, %v1713
        %v1726 = vadd.f32 %v1657, %v1716
        %v1727 = vadd.f32 %v1658, %v1718
        %s1728 = scalar_lea.vmem [#allocation2], 448
        %v1729 = vld [vmem:[%s1728] sm:$0xff]
        %v1730 = vld [vmem:[%s1728 + $0x10] sm:$0xff]
        %v1731 = vld [vmem:[%s1728 + $0x20] sm:$0xff]
        %v1732 = vld [vmem:[%s1728 + $0x30] sm:$0xff]
        %v1733 = vld [vmem:[%s1728 + $0x40] sm:$0xff]
        %v1734 = vld [vmem:[%s1728 + $0x50] sm:$0xff]
        %v1735 = vld [vmem:[%s1728 + $0x60] sm:$0xff]
        %v1736 = vld [vmem:[%s1728 + $0x70] sm:$0xff]
        %v1737 = vld [vmem:[%s6 + $0xc] sm:$0x3]
        %v1738 = vpack.c.bf16 %v1730, %v1729
        %v1739 = vpack.c.bf16 %v1732, %v1731
        %v1740 = vpack.c.bf16 %v1734, %v1733
        %v1741 = vpack.c.bf16 %v1736, %v1735
        %v1743 = vsel %vm425, %v1738, 0
        %v1746 = vsel %vm425, %v1739, 0
        %v1749 = vsel %vm425, %v1740, 0
        %v1752 = vsel %vm425, %v1741, 0
        %v1755 = vsel %vm557, %v1737, 0
        %1757 = vmatpush.bf16.msra.mxu0 0
        %1758 = vmatpush.bf16.msra.mxu0 0
        %1759 = vmatpush.bf16.msra.mxu0 0
        %1760 = vmatpush.bf16.msra.mxu0 0
        %1761 = vmatpush.bf16.msra.mxu0 0
        %1762 = vmatpush.bf16.msra.mxu0 0
        %1763 = vmatpush.bf16.msra.mxu0 0
        %1764 = vmatpush.bf16.msra.mxu0 %v1755
        %1765 = vmatmul.bf16.gmra.mxu0 %v1743
        %v1766 = vpop.f32.mrf.mxu0
        %v1767 = vadd.f32 0.0, %v1766
        %v1768 = vpop.f32.mrf.mxu0
        %v1769 = vadd.f32 0.0, %v1768
        %1770 = vmatmul.bf16.gmra.mxu0 %v1746
        %v1771 = vpop.f32.mrf.mxu0
        %v1772 = vadd.f32 0.0, %v1771
        %v1773 = vpop.f32.mrf.mxu0
        %v1774 = vadd.f32 0.0, %v1773
        %1775 = vmatmul.bf16.gmra.mxu0 %v1749
        %v1776 = vpop.f32.mrf.mxu0
        %v1777 = vadd.f32 0.0, %v1776
        %v1778 = vpop.f32.mrf.mxu0
        %v1779 = vadd.f32 0.0, %v1778
        %1780 = vmatmul.bf16.gmra.mxu0 %v1752
        %v1781 = vpop.f32.mrf.mxu0
        %v1782 = vadd.f32 0.0, %v1781
        %v1783 = vpop.f32.mrf.mxu0
        %v1784 = vadd.f32 0.0, %v1783
        %1785 = vdwg.mxu0
        %v1786 = vadd.f32 %v1720, %v1767
        %v1787 = vadd.f32 %v1721, %v1769
        %v1788 = vadd.f32 %v1722, %v1772
        %v1789 = vadd.f32 %v1723, %v1774
        %v1790 = vadd.f32 %v1724, %v1777
        %v1791 = vadd.f32 %v1725, %v1779
        %v1792 = vadd.f32 %v1726, %v1782
        %v1793 = vadd.f32 %v1727, %v1784
        %s1794 = scalar_lea.vmem [#allocation2], 304
        %v1795 = vld [vmem:[%s1794 + $0x1] sm:$0xff]
        %v1796 = vld [vmem:[%s1794 + $0x11] sm:$0xff]
        %v1797 = vld [vmem:[%s1794 + $0x21] sm:$0xff]
        %v1798 = vld [vmem:[%s1794 + $0x31] sm:$0xff]
        %v1799 = vld [vmem:[%s1794 + $0x41] sm:$0xff]
        %v1800 = vld [vmem:[%s1794 + $0x51] sm:$0xff]
        %v1801 = vld [vmem:[%s1794 + $0x61] sm:$0xff]
        %v1802 = vld [vmem:[%s1794 + $0x71] sm:$0xff]
        %v1803 = vld [vmem:[%s6 + $0xc] sm:$0xc]
        %v1804 = vpack.c.bf16 %v1796, %v1795
        %v1805 = vpack.c.bf16 %v1798, %v1797
        %v1806 = vpack.c.bf16 %v1800, %v1799
        %v1807 = vpack.c.bf16 %v1802, %v1801
        %v1809 = vunpack.c.l.b16 %v1803
        %v1810 = vpack.c.b16 %v1809, %v1809
        %v1811 = vrot.slane %v1810, 2
        %v1813 = vsel %vm425, %v1804, 0
        %v1816 = vsel %vm425, %v1805, 0
        %v1819 = vsel %vm425, %v1806, 0
        %v1822 = vsel %vm425, %v1807, 0
        %v1825 = vsel %vm557, %v1811, 0
        %1827 = vmatpush.bf16.msra.mxu0 0
        %1828 = vmatpush.bf16.msra.mxu0 0
        %1829 = vmatpush.bf16.msra.mxu0 0
        %1830 = vmatpush.bf16.msra.mxu0 0
        %1831 = vmatpush.bf16.msra.mxu0 0
        %1832 = vmatpush.bf16.msra.mxu0 0
        %1833 = vmatpush.bf16.msra.mxu0 0
        %1834 = vmatpush.bf16.msra.mxu0 %v1825
        %1835 = vmatmul.bf16.gmra.mxu0 %v1813
        %v1836 = vpop.f32.mrf.mxu0
        %v1837 = vadd.f32 0.0, %v1836
        %v1838 = vpop.f32.mrf.mxu0
        %v1839 = vadd.f32 0.0, %v1838
        %1840 = vmatmul.bf16.gmra.mxu0 %v1816
        %v1841 = vpop.f32.mrf.mxu0
        %v1842 = vadd.f32 0.0, %v1841
        %v1843 = vpop.f32.mrf.mxu0
        %v1844 = vadd.f32 0.0, %v1843
        %1845 = vmatmul.bf16.gmra.mxu0 %v1819
        %v1846 = vpop.f32.mrf.mxu0
        %v1847 = vadd.f32 0.0, %v1846
        %v1848 = vpop.f32.mrf.mxu0
        %v1849 = vadd.f32 0.0, %v1848
        %1850 = vmatmul.bf16.gmra.mxu0 %v1822
        %v1851 = vpop.f32.mrf.mxu0
        %v1852 = vadd.f32 0.0, %v1851
        %v1853 = vpop.f32.mrf.mxu0
        %v1854 = vadd.f32 0.0, %v1853
        %1855 = vdwg.mxu0
        %v1856 = vadd.f32 %v1786, %v1837
        %v1857 = vadd.f32 %v1787, %v1839
        %v1858 = vadd.f32 %v1788, %v1842
        %v1859 = vadd.f32 %v1789, %v1844
        %v1860 = vadd.f32 %v1790, %v1847
        %v1861 = vadd.f32 %v1791, %v1849
        %v1862 = vadd.f32 %v1792, %v1852
        %v1863 = vadd.f32 %v1793, %v1854
        %v1864 = vld [vmem:[%s1728 + $0x1] sm:$0xff]
        %v1865 = vld [vmem:[%s1728 + $0x11] sm:$0xff]
        %v1866 = vld [vmem:[%s1728 + $0x21] sm:$0xff]
        %v1867 = vld [vmem:[%s1728 + $0x31] sm:$0xff]
        %v1868 = vld [vmem:[%s1728 + $0x41] sm:$0xff]
        %v1869 = vld [vmem:[%s1728 + $0x51] sm:$0xff]
        %v1870 = vld [vmem:[%s1728 + $0x61] sm:$0xff]
        %v1871 = vld [vmem:[%s1728 + $0x71] sm:$0xff]
        %v1872 = vld [vmem:[%s6 + $0x10] sm:$0x3]
        %v1873 = vpack.c.bf16 %v1865, %v1864
        %v1874 = vpack.c.bf16 %v1867, %v1866
        %v1875 = vpack.c.bf16 %v1869, %v1868
        %v1876 = vpack.c.bf16 %v1871, %v1870
        %v1878 = vsel %vm425, %v1873, 0
        %v1881 = vsel %vm425, %v1874, 0
        %v1884 = vsel %vm425, %v1875, 0
        %v1887 = vsel %vm425, %v1876, 0
        %v1890 = vsel %vm557, %v1872, 0
        %1892 = vmatpush.bf16.msra.mxu0 0
        %1893 = vmatpush.bf16.msra.mxu0 0
        %1894 = vmatpush.bf16.msra.mxu0 0
        %1895 = vmatpush.bf16.msra.mxu0 0
        %1896 = vmatpush.bf16.msra.mxu0 0
        %1897 = vmatpush.bf16.msra.mxu0 0
        %1898 = vmatpush.bf16.msra.mxu0 0
        %1899 = vmatpush.bf16.msra.mxu0 %v1890
        %1900 = vmatmul.bf16.gmra.mxu0 %v1878
        %v1901 = vpop.f32.mrf.mxu0
        %v1902 = vadd.f32 0.0, %v1901
        %v1903 = vpop.f32.mrf.mxu0
        %v1904 = vadd.f32 0.0, %v1903
        %1905 = vmatmul.bf16.gmra.mxu0 %v1881
        %v1906 = vpop.f32.mrf.mxu0
        %v1907 = vadd.f32 0.0, %v1906
        %v1908 = vpop.f32.mrf.mxu0
        %v1909 = vadd.f32 0.0, %v1908
        %1910 = vmatmul.bf16.gmra.mxu0 %v1884
        %v1911 = vpop.f32.mrf.mxu0
        %v1912 = vadd.f32 0.0, %v1911
        %v1913 = vpop.f32.mrf.mxu0
        %v1914 = vadd.f32 0.0, %v1913
        %1915 = vmatmul.bf16.gmra.mxu0 %v1887
        %v1916 = vpop.f32.mrf.mxu0
        %v1917 = vadd.f32 0.0, %v1916
        %v1918 = vpop.f32.mrf.mxu0
        %v1919 = vadd.f32 0.0, %v1918
        %1920 = vdwg.mxu0
        %v1921 = vadd.f32 %v1856, %v1902
        %v1922 = vadd.f32 %v1857, %v1904
        %v1923 = vadd.f32 %v1858, %v1907
        %v1924 = vadd.f32 %v1859, %v1909
        %v1925 = vadd.f32 %v1860, %v1912
        %v1926 = vadd.f32 %v1861, %v1914
        %v1927 = vadd.f32 %v1862, %v1917
        %v1928 = vadd.f32 %v1863, %v1919
        %v1929 = vld [vmem:[%s7] sm:$0x1]
        %v1931 = vperm.slane %v1929, 0
        %v1933 = vadd.f32 %v1921, %v1931
        %v1934 = vadd.f32 %v1922, %v1931
        %v1935 = vadd.f32 %v1923, %v1931
        %v1936 = vadd.f32 %v1924, %v1931
        %v1937 = vadd.f32 %v1925, %v1931
        %v1938 = vadd.f32 %v1926, %v1931
        %v1939 = vadd.f32 %v1927, %v1931
        %v1940 = vadd.f32 %v1928, %v1931
        %vm1941 = vcmp.ge.f32.partialorder %v1933, 0.0
        %vm1942 = vcmp.ge.f32.partialorder %v1934, 0.0
        %vm1943 = vcmp.ge.f32.partialorder %v1935, 0.0
        %vm1944 = vcmp.ge.f32.partialorder %v1936, 0.0
        %vm1945 = vcmp.ge.f32.partialorder %v1937, 0.0
        %vm1946 = vcmp.ge.f32.partialorder %v1938, 0.0
        %vm1947 = vcmp.ge.f32.partialorder %v1939, 0.0
        %vm1948 = vcmp.ge.f32.partialorder %v1940, 0.0
        %v1949 = vstv %s424
        %v1950 = vmul.f32 %v1949, %v1933
        %v1951 = vmul.f32 %v1949, %v1934
        %v1952 = vmul.f32 %v1949, %v1935
        %v1953 = vmul.f32 %v1949, %v1936
        %v1954 = vmul.f32 %v1949, %v1937
        %v1955 = vmul.f32 %v1949, %v1938
        %v1956 = vmul.f32 %v1949, %v1939
        %v1957 = vmul.f32 %v1949, %v1940
        %v1958 = vsel %vm1941, %v1933, %v1950
        %v1959 = vsel %vm1942, %v1934, %v1951
        %v1960 = vsel %vm1943, %v1935, %v1952
        %v1961 = vsel %vm1944, %v1936, %v1953
        %v1962 = vsel %vm1945, %v1937, %v1954
        %v1963 = vsel %vm1946, %v1938, %v1955
        %v1964 = vsel %vm1947, %v1939, %v1956
        %v1965 = vsel %vm1948, %v1940, %v1957
        %1966 = vst.msk [vmem:[#allocation3] sm:$0xff] %vm425, %v1958
        %1967 = vst.msk [vmem:[#allocation3 + $0x10] sm:$0xff] %vm425, %v1959
        %1968 = vst.msk [vmem:[#allocation3 + $0x20] sm:$0xff] %vm425, %v1960
        %1969 = vst.msk [vmem:[#allocation3 + $0x30] sm:$0xff] %vm425, %v1961
        %1970 = vst.msk [vmem:[#allocation3 + $0x40] sm:$0xff] %vm425, %v1962
        %1971 = vst.msk [vmem:[#allocation3 + $0x50] sm:$0xff] %vm425, %v1963
        %1972 = vst.msk [vmem:[#allocation3 + $0x60] sm:$0xff] %vm425, %v1964
        %1973 = vst.msk [vmem:[#allocation3 + $0x70] sm:$0xff] %vm425, %v1965
        %v1974 = vld [vmem:[#allocation3] sm:$0xff]
        %v1975 = vld [vmem:[#allocation3 + $0x10] sm:$0xff]
        %v1976 = vld [vmem:[#allocation3 + $0x20] sm:$0xff]
        %v1977 = vld [vmem:[#allocation3 + $0x30] sm:$0xff]
        %v1978 = vld [vmem:[#allocation3 + $0x40] sm:$0xff]
        %v1979 = vld [vmem:[#allocation3 + $0x50] sm:$0xff]
        %v1980 = vld [vmem:[#allocation3 + $0x60] sm:$0xff]
        %v1981 = vld [vmem:[#allocation3 + $0x70] sm:$0xff]
        %v1982 = vld [vmem:[%s8] sm:$0x3]
        %v1983 = vpack.c.bf16 %v1975, %v1974
        %v1984 = vpack.c.bf16 %v1977, %v1976
        %v1985 = vpack.c.bf16 %v1979, %v1978
        %v1986 = vpack.c.bf16 %v1981, %v1980
        %v1987 = vld [vmem:[#allocation3 + $0x1] sm:$0xff]
        %v1988 = vld [vmem:[#allocation3 + $0x11] sm:$0xff]
        %v1989 = vld [vmem:[#allocation3 + $0x21] sm:$0xff]
        %v1990 = vld [vmem:[#allocation3 + $0x31] sm:$0xff]
        %v1991 = vld [vmem:[#allocation3 + $0x41] sm:$0xff]
        %v1992 = vld [vmem:[#allocation3 + $0x51] sm:$0xff]
        %v1993 = vld [vmem:[#allocation3 + $0x61] sm:$0xff]
        %v1994 = vld [vmem:[#allocation3 + $0x71] sm:$0xff]
        %v1995 = vld [vmem:[%s8] sm:$0xc]
        %v1996 = vpack.c.bf16 %v1988, %v1987
        %v1997 = vpack.c.bf16 %v1990, %v1989
        %v1998 = vpack.c.bf16 %v1992, %v1991
        %v1999 = vpack.c.bf16 %v1994, %v1993
        %v2001 = vunpack.c.l.b16 %v1995
        %v2002 = vpack.c.b16 %v2001, %v2001
        %v2003 = vrot.slane %v2002, 2
        %v2005 = vsel %vm425, %v1996, 0
        %v2008 = vsel %vm425, %v1997, 0
        %v2011 = vsel %vm425, %v1998, 0
        %v2014 = vsel %vm425, %v1999, 0
        %v2017 = vsel %vm557, %v2003, 0
        %2019 = vmatpush.bf16.msra.mxu0 0
        %2020 = vmatpush.bf16.msra.mxu0 0
        %2021 = vmatpush.bf16.msra.mxu0 0
        %2022 = vmatpush.bf16.msra.mxu0 0
        %2023 = vmatpush.bf16.msra.mxu0 0
        %2024 = vmatpush.bf16.msra.mxu0 0
        %2025 = vmatpush.bf16.msra.mxu0 0
        %2026 = vmatpush.bf16.msra.mxu0 %v2017
        %2027 = vmatmul.bf16.gmra.mxu0 %v2005
        %v2028 = vpop.f32.mrf.mxu0
        %v2029 = vadd.f32 0.0, %v2028
        %v2030 = vpop.f32.mrf.mxu0
        %v2031 = vadd.f32 0.0, %v2030
        %2032 = vmatmul.bf16.gmra.mxu0 %v2008
        %v2033 = vpop.f32.mrf.mxu0
        %v2034 = vadd.f32 0.0, %v2033
        %v2035 = vpop.f32.mrf.mxu0
        %v2036 = vadd.f32 0.0, %v2035
        %2037 = vmatmul.bf16.gmra.mxu0 %v2011
        %v2038 = vpop.f32.mrf.mxu0
        %v2039 = vadd.f32 0.0, %v2038
        %v2040 = vpop.f32.mrf.mxu0
        %v2041 = vadd.f32 0.0, %v2040
        %2042 = vmatmul.bf16.gmra.mxu0 %v2014
        %v2043 = vpop.f32.mrf.mxu0
        %v2044 = vadd.f32 0.0, %v2043
        %v2045 = vpop.f32.mrf.mxu0
        %v2046 = vadd.f32 0.0, %v2045
        %2047 = vdwg.mxu0
        %v2049 = vsel %vm425, %v1983, 0
        %v2052 = vsel %vm425, %v1984, 0
        %v2055 = vsel %vm425, %v1985, 0
        %v2058 = vsel %vm425, %v1986, 0
        %v2061 = vsel %vm557, %v1982, 0
        %2063 = vmatpush.bf16.msra.mxu0 0
        %2064 = vmatpush.bf16.msra.mxu0 0
        %2065 = vmatpush.bf16.msra.mxu0 0
        %2066 = vmatpush.bf16.msra.mxu0 0
        %2067 = vmatpush.bf16.msra.mxu0 0
        %2068 = vmatpush.bf16.msra.mxu0 0
        %2069 = vmatpush.bf16.msra.mxu0 0
        %2070 = vmatpush.bf16.msra.mxu0 %v2061
        %2071 = vmatmul.bf16.gmra.mxu0 %v2049
        %v2072 = vpop.f32.mrf.mxu0
        %v2073 = vadd.f32 %v2029, %v2072
        %v2074 = vpop.f32.mrf.mxu0
        %v2075 = vadd.f32 %v2031, %v2074
        %2076 = vmatmul.bf16.gmra.mxu0 %v2052
        %v2077 = vpop.f32.mrf.mxu0
        %v2078 = vadd.f32 %v2034, %v2077
        %v2079 = vpop.f32.mrf.mxu0
        %v2080 = vadd.f32 %v2036, %v2079
        %2081 = vmatmul.bf16.gmra.mxu0 %v2055
        %v2082 = vpop.f32.mrf.mxu0
        %v2083 = vadd.f32 %v2039, %v2082
        %v2084 = vpop.f32.mrf.mxu0
        %v2085 = vadd.f32 %v2041, %v2084
        %2086 = vmatmul.bf16.gmra.mxu0 %v2058
        %v2087 = vpop.f32.mrf.mxu0
        %v2088 = vadd.f32 %v2044, %v2087
        %v2089 = vpop.f32.mrf.mxu0
        %v2090 = vadd.f32 %v2046, %v2089
        %2091 = vdwg.mxu0
        %s2092 = scalar_lea.vmem [#allocation3], 16
        %v2093 = vld [vmem:[%s2092] sm:$0xff]
        %v2094 = vld [vmem:[%s2092 + $0x10] sm:$0xff]
        %v2095 = vld [vmem:[%s2092 + $0x20] sm:$0xff]
        %v2096 = vld [vmem:[%s2092 + $0x30] sm:$0xff]
        %v2097 = vld [vmem:[%s2092 + $0x40] sm:$0xff]
        %v2098 = vld [vmem:[%s2092 + $0x50] sm:$0xff]
        %v2099 = vld [vmem:[%s2092 + $0x60] sm:$0xff]
        %v2100 = vld [vmem:[%s2092 + $0x70] sm:$0xff]
        %v2101 = vld [vmem:[%s8 + $0x4] sm:$0x3]
        %v2102 = vpack.c.bf16 %v2094, %v2093
        %v2103 = vpack.c.bf16 %v2096, %v2095
        %v2104 = vpack.c.bf16 %v2098, %v2097
        %v2105 = vpack.c.bf16 %v2100, %v2099
        %v2107 = vsel %vm425, %v2102, 0
        %v2110 = vsel %vm425, %v2103, 0
        %v2113 = vsel %vm425, %v2104, 0
        %v2116 = vsel %vm425, %v2105, 0
        %v2119 = vsel %vm557, %v2101, 0
        %2121 = vmatpush.bf16.msra.mxu0 0
        %2122 = vmatpush.bf16.msra.mxu0 0
        %2123 = vmatpush.bf16.msra.mxu0 0
        %2124 = vmatpush.bf16.msra.mxu0 0
        %2125 = vmatpush.bf16.msra.mxu0 0
        %2126 = vmatpush.bf16.msra.mxu0 0
        %2127 = vmatpush.bf16.msra.mxu0 0
        %2128 = vmatpush.bf16.msra.mxu0 %v2119
        %2129 = vmatmul.bf16.gmra.mxu0 %v2107
        %v2130 = vpop.f32.mrf.mxu0
        %v2131 = vadd.f32 0.0, %v2130
        %v2132 = vpop.f32.mrf.mxu0
        %v2133 = vadd.f32 0.0, %v2132
        %2134 = vmatmul.bf16.gmra.mxu0 %v2110
        %v2135 = vpop.f32.mrf.mxu0
        %v2136 = vadd.f32 0.0, %v2135
        %v2137 = vpop.f32.mrf.mxu0
        %v2138 = vadd.f32 0.0, %v2137
        %2139 = vmatmul.bf16.gmra.mxu0 %v2113
        %v2140 = vpop.f32.mrf.mxu0
        %v2141 = vadd.f32 0.0, %v2140
        %v2142 = vpop.f32.mrf.mxu0
        %v2143 = vadd.f32 0.0, %v2142
        %2144 = vmatmul.bf16.gmra.mxu0 %v2116
        %v2145 = vpop.f32.mrf.mxu0
        %v2146 = vadd.f32 0.0, %v2145
        %v2147 = vpop.f32.mrf.mxu0
        %v2148 = vadd.f32 0.0, %v2147
        %2149 = vdwg.mxu0
        %v2150 = vadd.f32 %v2073, %v2131
        %v2151 = vadd.f32 %v2075, %v2133
        %v2152 = vadd.f32 %v2078, %v2136
        %v2153 = vadd.f32 %v2080, %v2138
        %v2154 = vadd.f32 %v2083, %v2141
        %v2155 = vadd.f32 %v2085, %v2143
        %v2156 = vadd.f32 %v2088, %v2146
        %v2157 = vadd.f32 %v2090, %v2148
        %v2158 = vld [vmem:[%s2092 + $0x1] sm:$0xff]
        %v2159 = vld [vmem:[%s2092 + $0x11] sm:$0xff]
        %v2160 = vld [vmem:[%s2092 + $0x21] sm:$0xff]
        %v2161 = vld [vmem:[%s2092 + $0x31] sm:$0xff]
        %v2162 = vld [vmem:[%s2092 + $0x41] sm:$0xff]
        %v2163 = vld [vmem:[%s2092 + $0x51] sm:$0xff]
        %v2164 = vld [vmem:[%s2092 + $0x61] sm:$0xff]
        %v2165 = vld [vmem:[%s2092 + $0x71] sm:$0xff]
        %v2166 = vld [vmem:[%s8 + $0x4] sm:$0xc]
        %v2167 = vpack.c.bf16 %v2159, %v2158
        %v2168 = vpack.c.bf16 %v2161, %v2160
        %v2169 = vpack.c.bf16 %v2163, %v2162
        %v2170 = vpack.c.bf16 %v2165, %v2164
        %v2172 = vunpack.c.l.b16 %v2166
        %v2173 = vpack.c.b16 %v2172, %v2172
        %v2174 = vrot.slane %v2173, 2
        %v2176 = vsel %vm425, %v2167, 0
        %v2179 = vsel %vm425, %v2168, 0
        %v2182 = vsel %vm425, %v2169, 0
        %v2185 = vsel %vm425, %v2170, 0
        %v2188 = vsel %vm557, %v2174, 0
        %2190 = vmatpush.bf16.msra.mxu0 0
        %2191 = vmatpush.bf16.msra.mxu0 0
        %2192 = vmatpush.bf16.msra.mxu0 0
        %2193 = vmatpush.bf16.msra.mxu0 0
        %2194 = vmatpush.bf16.msra.mxu0 0
        %2195 = vmatpush.bf16.msra.mxu0 0
        %2196 = vmatpush.bf16.msra.mxu0 0
        %2197 = vmatpush.bf16.msra.mxu0 %v2188
        %2198 = vmatmul.bf16.gmra.mxu0 %v2176
        %v2199 = vpop.f32.mrf.mxu0
        %v2200 = vadd.f32 0.0, %v2199
        %v2201 = vpop.f32.mrf.mxu0
        %v2202 = vadd.f32 0.0, %v2201
        %2203 = vmatmul.bf16.gmra.mxu0 %v2179
        %v2204 = vpop.f32.mrf.mxu0
        %v2205 = vadd.f32 0.0, %v2204
        %v2206 = vpop.f32.mrf.mxu0
        %v2207 = vadd.f32 0.0, %v2206
        %2208 = vmatmul.bf16.gmra.mxu0 %v2182
        %v2209 = vpop.f32.mrf.mxu0
        %v2210 = vadd.f32 0.0, %v2209
        %v2211 = vpop.f32.mrf.mxu0
        %v2212 = vadd.f32 0.0, %v2211
        %2213 = vmatmul.bf16.gmra.mxu0 %v2185
        %v2214 = vpop.f32.mrf.mxu0
        %v2215 = vadd.f32 0.0, %v2214
        %v2216 = vpop.f32.mrf.mxu0
        %v2217 = vadd.f32 0.0, %v2216
        %2218 = vdwg.mxu0
        %v2219 = vadd.f32 %v2150, %v2200
        %v2220 = vadd.f32 %v2151, %v2202
        %v2221 = vadd.f32 %v2152, %v2205
        %v2222 = vadd.f32 %v2153, %v2207
        %v2223 = vadd.f32 %v2154, %v2210
        %v2224 = vadd.f32 %v2155, %v2212
        %v2225 = vadd.f32 %v2156, %v2215
        %v2226 = vadd.f32 %v2157, %v2217
        %v2227 = vld [vmem:[%s9] sm:$0x1]
        %v2229 = vperm.slane %v2227, 0
        %v2231 = vadd.f32 %v2219, %v2229
        %v2232 = vadd.f32 %v2220, %v2229
        %v2233 = vadd.f32 %v2221, %v2229
        %v2234 = vadd.f32 %v2222, %v2229
        %v2235 = vadd.f32 %v2223, %v2229
        %v2236 = vadd.f32 %v2224, %v2229
        %v2237 = vadd.f32 %v2225, %v2229
        %v2238 = vadd.f32 %v2226, %v2229
        %v2239 = vsub.f32 0.0, %v2231
        %v2240 = vsub.f32 0.0, %v2232
        %v2241 = vsub.f32 0.0, %v2233
        %v2242 = vsub.f32 0.0, %v2234
        %v2243 = vsub.f32 0.0, %v2235
        %v2244 = vsub.f32 0.0, %v2236
        %v2245 = vsub.f32 0.0, %v2237
        %v2246 = vsub.f32 0.0, %v2238
        %v2247 = vmul.f32 %v2239, 1.442695
        %v2248 = vpow.pop %v2247
        %v2249 = vmul.f32 %v2240, 1.442695
        %v2250 = vpow.pop %v2249
        %v2251 = vmul.f32 %v2241, 1.442695
        %v2252 = vpow.pop %v2251
        %v2253 = vmul.f32 %v2242, 1.442695
        %v2254 = vpow.pop %v2253
        %v2255 = vmul.f32 %v2243, 1.442695
        %v2256 = vpow.pop %v2255
        %v2257 = vmul.f32 %v2244, 1.442695
        %v2258 = vpow.pop %v2257
        %v2259 = vmul.f32 %v2245, 1.442695
        %v2260 = vpow.pop %v2259
        %v2261 = vmul.f32 %v2246, 1.442695
        %v2262 = vpow.pop %v2261
        %v2263 = vadd.f32 %v2248, 1.0
        %v2264 = vadd.f32 %v2250, 1.0
        %v2265 = vadd.f32 %v2252, 1.0
        %v2266 = vadd.f32 %v2254, 1.0
        %v2267 = vadd.f32 %v2256, 1.0
        %v2268 = vadd.f32 %v2258, 1.0
        %v2269 = vadd.f32 %v2260, 1.0
        %v2270 = vadd.f32 %v2262, 1.0
        %v2271 = vrcp.pop %v2263
        %v2272 = vmul.f32 %v2263, %v2271
        %v2273 = vsub.f32 1.0, %v2272
        %v2274 = vmul.f32 %v2271, %v2273
        %v2275 = vadd.f32 %v2271, %v2274
        %vm2276 = vweird.f32 %v2263
        %vm2277 = vweird.f32 %v2271
        %vm2278 = vmor %vm2276, %vm2277
        %v2279 = vsel %vm2278, %v2271, %v2275
        %v2280 = vand.u32 2147483647, %v2263
        %vm2281 = vcmp.eq.f32.partialorder %v2280, 8.507059e+37
        %v2282 = vand.u32 %v2263, 2147483648
        %v2283 = vor.u32 1.1754944e-38, %v2282
        %v2284 = vsel %vm2281, %v2283, %v2279
        %v2285 = vmul.f32 1.0, %v2284
        %v2286 = vrcp.pop %v2264
        %v2287 = vmul.f32 %v2264, %v2286
        %v2288 = vsub.f32 1.0, %v2287
        %v2289 = vmul.f32 %v2286, %v2288
        %v2290 = vadd.f32 %v2286, %v2289
        %vm2291 = vweird.f32 %v2264
        %vm2292 = vweird.f32 %v2286
        %vm2293 = vmor %vm2291, %vm2292
        %v2294 = vsel %vm2293, %v2286, %v2290
        %v2295 = vand.u32 2147483647, %v2264
        %vm2296 = vcmp.eq.f32.partialorder %v2295, 8.507059e+37
        %v2297 = vand.u32 %v2264, 2147483648
        %v2298 = vor.u32 1.1754944e-38, %v2297
        %v2299 = vsel %vm2296, %v2298, %v2294
        %v2300 = vmul.f32 1.0, %v2299
        %v2301 = vrcp.pop %v2265
        %v2302 = vmul.f32 %v2265, %v2301
        %v2303 = vsub.f32 1.0, %v2302
        %v2304 = vmul.f32 %v2301, %v2303
        %v2305 = vadd.f32 %v2301, %v2304
        %vm2306 = vweird.f32 %v2265
        %vm2307 = vweird.f32 %v2301
        %vm2308 = vmor %vm2306, %vm2307
        %v2309 = vsel %vm2308, %v2301, %v2305
        %v2310 = vand.u32 2147483647, %v2265
        %vm2311 = vcmp.eq.f32.partialorder %v2310, 8.507059e+37
        %v2312 = vand.u32 %v2265, 2147483648
        %v2313 = vor.u32 1.1754944e-38, %v2312
        %v2314 = vsel %vm2311, %v2313, %v2309
        %v2315 = vmul.f32 1.0, %v2314
        %v2316 = vrcp.pop %v2266
        %v2317 = vmul.f32 %v2266, %v2316
        %v2318 = vsub.f32 1.0, %v2317
        %v2319 = vmul.f32 %v2316, %v2318
        %v2320 = vadd.f32 %v2316, %v2319
        %vm2321 = vweird.f32 %v2266
        %vm2322 = vweird.f32 %v2316
        %vm2323 = vmor %vm2321, %vm2322
        %v2324 = vsel %vm2323, %v2316, %v2320
        %v2325 = vand.u32 2147483647, %v2266
        %vm2326 = vcmp.eq.f32.partialorder %v2325, 8.507059e+37
        %v2327 = vand.u32 %v2266, 2147483648
        %v2328 = vor.u32 1.1754944e-38, %v2327
        %v2329 = vsel %vm2326, %v2328, %v2324
        %v2330 = vmul.f32 1.0, %v2329
        %v2331 = vrcp.pop %v2267
        %v2332 = vmul.f32 %v2267, %v2331
        %v2333 = vsub.f32 1.0, %v2332
        %v2334 = vmul.f32 %v2331, %v2333
        %v2335 = vadd.f32 %v2331, %v2334
        %vm2336 = vweird.f32 %v2267
        %vm2337 = vweird.f32 %v2331
        %vm2338 = vmor %vm2336, %vm2337
        %v2339 = vsel %vm2338, %v2331, %v2335
        %v2340 = vand.u32 2147483647, %v2267
        %vm2341 = vcmp.eq.f32.partialorder %v2340, 8.507059e+37
        %v2342 = vand.u32 %v2267, 2147483648
        %v2343 = vor.u32 1.1754944e-38, %v2342
        %v2344 = vsel %vm2341, %v2343, %v2339
        %v2345 = vmul.f32 1.0, %v2344
        %v2346 = vrcp.pop %v2268
        %v2347 = vmul.f32 %v2268, %v2346
        %v2348 = vsub.f32 1.0, %v2347
        %v2349 = vmul.f32 %v2346, %v2348
        %v2350 = vadd.f32 %v2346, %v2349
        %vm2351 = vweird.f32 %v2268
        %vm2352 = vweird.f32 %v2346
        %vm2353 = vmor %vm2351, %vm2352
        %v2354 = vsel %vm2353, %v2346, %v2350
        %v2355 = vand.u32 2147483647, %v2268
        %vm2356 = vcmp.eq.f32.partialorder %v2355, 8.507059e+37
        %v2357 = vand.u32 %v2268, 2147483648
        %v2358 = vor.u32 1.1754944e-38, %v2357
        %v2359 = vsel %vm2356, %v2358, %v2354
        %v2360 = vmul.f32 1.0, %v2359
        %v2361 = vrcp.pop %v2269
        %v2362 = vmul.f32 %v2269, %v2361
        %v2363 = vsub.f32 1.0, %v2362
        %v2364 = vmul.f32 %v2361, %v2363
        %v2365 = vadd.f32 %v2361, %v2364
        %vm2366 = vweird.f32 %v2269
        %vm2367 = vweird.f32 %v2361
        %vm2368 = vmor %vm2366, %vm2367
        %v2369 = vsel %vm2368, %v2361, %v2365
        %v2370 = vand.u32 2147483647, %v2269
        %vm2371 = vcmp.eq.f32.partialorder %v2370, 8.507059e+37
        %v2372 = vand.u32 %v2269, 2147483648
        %v2373 = vor.u32 1.1754944e-38, %v2372
        %v2374 = vsel %vm2371, %v2373, %v2369
        %v2375 = vmul.f32 1.0, %v2374
        %v2376 = vrcp.pop %v2270
        %v2377 = vmul.f32 %v2270, %v2376
        %v2378 = vsub.f32 1.0, %v2377
        %v2379 = vmul.f32 %v2376, %v2378
        %v2380 = vadd.f32 %v2376, %v2379
        %vm2381 = vweird.f32 %v2270
        %vm2382 = vweird.f32 %v2376
        %vm2383 = vmor %vm2381, %vm2382
        %v2384 = vsel %vm2383, %v2376, %v2380
        %v2385 = vand.u32 2147483647, %v2270
        %vm2386 = vcmp.eq.f32.partialorder %v2385, 8.507059e+37
        %v2387 = vand.u32 %v2270, 2147483648
        %v2388 = vor.u32 1.1754944e-38, %v2387
        %v2389 = vsel %vm2386, %v2388, %v2384
        %v2390 = vmul.f32 1.0, %v2389
        %vm2391 = vcmask 261120
        %2392 = vst.msk [vmem:[%s420] sm:$0xff] %vm2391, %v2285
        %2393 = vst.msk [vmem:[%s420 + $0x8] sm:$0xff] %vm2391, %v2300
        %2394 = vst.msk [vmem:[%s420 + $0x10] sm:$0xff] %vm2391, %v2315
        %2395 = vst.msk [vmem:[%s420 + $0x18] sm:$0xff] %vm2391, %v2330
        %2396 = vst.msk [vmem:[%s420 + $0x20] sm:$0xff] %vm2391, %v2345
        %2397 = vst.msk [vmem:[%s420 + $0x28] sm:$0xff] %vm2391, %v2360
        %2398 = vst.msk [vmem:[%s420 + $0x30] sm:$0xff] %vm2391, %v2375
        %2399 = vst.msk [vmem:[%s420 + $0x38] sm:$0xff] %vm2391, %v2390
        %p2400 = scmp.lt.s32.totalorder %s23, 1
        %s2401 = scalar_select %p2400, %s23, 1
        %s2402 = smul.addr %s2401, 8
        %s2403 = smul.addr %s2402, 8
        %s2404 = scalar_lea.vmem %s11, %s2403
        // Predicated region
        $region69: #{spatial_att_forward.1} parent=63 // pred_check
          %p2405 = pneg %p282
        $region70: #{spatial_att_forward.1} parent=63 // pred_check_branch
          %2407 = sbr.rel (%p2405) target = $region72
        $region71: #{spatial_att_forward.1} parent=63 // pred_region
          _
        $region72: #{spatial_att_forward.1} parent=63 // pred_fallthru
          _
      $region64: #{spatial_att_forward.1} parent=5 // pred_fallthru
        _
      %p2408 = scmp.le.s32.totalorder 2, %s18
      // Predicated region
      $region73: #{spatial_att_forward.1} parent=5 // pred_check
        %p2409 = pneg %p2408
      $region74: #{spatial_att_forward.1} parent=5 // pred_check_branch
        %2411 = sbr.rel (%p2409) target = $region76
      $region75: #{spatial_att_forward.1} parent=5 // pred_region
        %s2412 = ssub.s32 %s18, 2
        // Predicated region
        $region77: #{spatial_att_forward.1} parent=75 // pred_check
          %p2413 = pneg %p288
        $region78: #{spatial_att_forward.1} parent=75 // pred_check_branch
          %2415 = sbr.rel (%p2413) target = $region80
        $region79: #{spatial_att_forward.1} parent=75 // pred_region
          %p2416 = scmp.lt.s32.totalorder %s24, 1
          %s2417 = scalar_select %p2416, %s24, 1
          %s2418 = smul.addr %s2417, 8
          %s2419 = smul.addr %s2418, 8
          %s2420 = scalar_lea.vmem %s11, %s2419
        $region80: #{spatial_att_forward.1} parent=75 // pred_fallthru
          _
      $region76: #{spatial_att_forward.1} parent=5 // pred_fallthru
        _
    $region6: #{spatial_att_forward.1} parent=1 // loop_footer
      %s22 = sadd.s32 1, %s18
    $region7: #{spatial_att_forward.1} parent=1 // loop_footer_branch
      %17 = sbr.rel target = $region3
    $region8: #{spatial_att_forward.1} parent=1 // loop_exit
      _
    %2421 = vsyncpa [#allocation5], 1
    %s2422 = scalar_lea.sflag [#allocation5], 1
    %2423 = vsyncpa %s2422, 1

</llo_original>
